<compile_context>
chip_gen: v7x
topology: tpu7x:2x2x1
jax: 0.10.0
libtpu: 0.0.40
codegen_flags: <defaults>
</compile_context>

<pallas_src>
import jax
import jax.numpy as jnp
from jax.experimental import pallas as pl
from jax.experimental.pallas import tpu as pltpu


IMG_SHAPE = (32, 32)
INPUT_DIM = IMG_SHAPE[0] * IMG_SHAPE[1]          # 1024
ENC_DIMS = [INPUT_DIM, 128, 64, 12, 3]           # encoder layer sizes
DEC_DIMS = [3, 12, 64, 128, INPUT_DIM]           # decoder layer sizes


def _round_up(n, m):
    return ((n + m - 1) // m) * m


# ----------------------------------------------------------------------------
# Fused autoencoder kernel: one (tm, 1024) batch tile in, one tile out.
# Seven fused layers (the 12->3->12 bottleneck is pre-folded into one 12->12).
# ----------------------------------------------------------------------------
def _linear_ae_kernel(x_ref,
                      w1, b1, w2, b2, w3, b3, wm, bm,
                      w5, b5, w6, b6, w7, b7,
                      o_ref):
    def lin(h, w_ref, b_ref, act):
        # bf16 operands on the MXU, f32 accumulation, f32 bias add.
        y = jnp.dot(h.astype(w_ref.dtype), w_ref[...],
                    preferred_element_type=jnp.float32)
        y = y + b_ref[...]
        if act == "relu":
            y = jnp.maximum(y, 0.0)
        elif act == "tanh":
            y = jnp.tanh(y)
        return y

    h = x_ref[...]
    h = lin(h, w1, b1, "relu")    # 1024 -> 128
    h = lin(h, w2, b2, "relu")    # 128  -> 64
    h = lin(h, w3, b3, "relu")    # 64   -> 12
    h = lin(h, wm, bm, "relu")    # 12 -> (3) -> 12  (folded; ReLU from decoder)
    h = lin(h, w5, b5, "relu")    # 12   -> 64
    h = lin(h, w6, b6, "relu")    # 64   -> 128
    h = lin(h, w7, b7, "tanh")    # 128  -> 1024
    o_ref[...] = h.astype(o_ref.dtype)


# ----------------------------------------------------------------------------
# Parameter init (PyTorch nn.Linear-style U(-1/sqrt(fan_in), 1/sqrt(fan_in))).
# Weights are stored ALREADY TRANSPOSED as (in, out); biases as (1, out).
# ----------------------------------------------------------------------------
def init_params(seed=42):
    n_layers = len(ENC_DIMS) - 1 + len(DEC_DIMS) - 1
    keys = iter(jax.random.split(jax.random.PRNGKey(seed), 2 * n_layers))
    params = []

    def lin_p(din, dout):
        bound = 1.0 / jnp.sqrt(jnp.float32(din))
        w = jax.random.uniform(next(keys), (din, dout), jnp.float32, -bound, bound)
        b = jax.random.uniform(next(keys), (1, dout), jnp.float32, -bound, bound)
        params.append(w)
        params.append(b)

    for din, dout in zip(ENC_DIMS[:-1], ENC_DIMS[1:]):
        lin_p(din, dout)
    for din, dout in zip(DEC_DIMS[:-1], DEC_DIMS[1:]):
        lin_p(din, dout)
    return tuple(params)


def _kernel_params(params):
    """Fold the 12->3->12 bottleneck; cast weights to bf16 (biases stay f32)."""
    (we1, be1, we2, be2, we3, be3, we4, be4,
     wd1, bd1, wd2, bd2, wd3, bd3, wd4, bd4) = params
    wm = we4 @ wd1                # (12, 3) @ (3, 12) -> (12, 12)
    bm = be4 @ wd1 + bd1          # (1, 12)
    ws = [we1, we2, we3, wm, wd2, wd3, wd4]
    bs = [be1, be2, be3, bm, bd2, bd3, bd4]
    kp = []
    for w, b in zip(ws, bs):
        kp.append(w.astype(jnp.bfloat16))
        kp.append(b.astype(jnp.float32))
    return kp


# ----------------------------------------------------------------------------
# Forward pass wrapper.
# ----------------------------------------------------------------------------
def linear_ae_forward(params, x):
    """x: (B, ...) with prod(...) == 1024 (e.g. (B,1,32,32)). Returns (B, 1024)."""
    B = x.shape[0]
    x2 = x.reshape(B, -1).astype(jnp.float32)       # Flatten (row-major, as torch)
    assert x2.shape[1] == INPUT_DIM, x2.shape

    kparams = _kernel_params(params)

    # Batch tiling (rows padded to a sublane multiple):
    #   * tiny batches   : single block
    #   * 16 <= B <= 1024: exactly two tiles -> both v7x TensorCores busy
    #   * larger batches : 512-row tiles
    if B < 16:
        Bp = _round_up(B, 8)
        tm = Bp
    elif B <= 1024:
        Bp = _round_up(B, 16)
        tm = Bp // 2
    else:
        tm = 512
        Bp = _round_up(B, tm)
    if Bp != B:
        x2 = jnp.pad(x2, ((0, Bp - B), (0, 0)))

    grid = (Bp // tm,)
    row_spec = pl.BlockSpec((tm, INPUT_DIM), lambda i: (i, 0))
    # Grid-invariant full-array blocks for every weight / bias.
    param_specs = [pl.BlockSpec(p.shape, lambda i: (0, 0)) for p in kparams]

    out = pl.pallas_call(
        _linear_ae_kernel,
        out_shape=jax.ShapeDtypeStruct((Bp, INPUT_DIM), jnp.float32),
        grid=grid,
        in_specs=[row_spec] + param_specs,
        out_specs=row_spec,
        compiler_params=pltpu.CompilerParams(
            dimension_semantics=("parallel",),       # batch tiles across v7x's 2 TCs
            vmem_limit_bytes=40 * 1024 * 1024),      # safe on v5e/v6e/v7x
    )(x2, *kparams)

    return out[:B]


# ----------------------------------------------------------------------------
if __name__ == "__main__":
    params = init_params(seed=42)

    # Pure-JAX f32 reference (unfused 8-layer network) for numerical sanity.
    def ref_fwd(params, x):
        h = x.reshape(x.shape[0], -1).astype(jnp.float32)
        ws = params[0::2]
        bs = params[1::2]
        acts = ["relu", "relu", "relu", None, "relu", "relu", "relu", "tanh"]
        for w, b, a in zip(ws, bs, acts):
            h = h @ w + b
            if a == "relu":
                h = jnp.maximum(h, 0.0)
            elif a == "tanh":
                h = jnp.tanh(h)
        return h

    fwd = jax.jit(linear_ae_forward)

    # batch=2 exercises the small-batch single-tile path; batch=40 exercises
    # the two-tile (dual-TC) path with row padding.
    for batch, key in ((2, 0), (40, 1)):
        x = jax.random.normal(jax.random.PRNGKey(key),
                              (batch, 1, IMG_SHAPE[0], IMG_SHAPE[1]),
                              jnp.float32)
        out = jax.block_until_ready(fwd(params, x))

        assert out.shape == (batch, INPUT_DIM), out.shape
        assert bool(jnp.all(jnp.isfinite(out)))
        assert bool(jnp.max(jnp.abs(out)) <= 1.0 + 1e-6)   # tanh output range

        ref = ref_fwd(params, x)
        err = float(jnp.max(jnp.abs(out - ref)))
        # bf16 matmuls + folded bottleneck -> relaxed tolerance vs the f32 ref.
        assert err < 1e-1, err

    print("KERNEL_OK")
</pallas_src>

<mosaic_0001>
module attributes {stable_mosaic.version = 11 : i64} {
  func.func @_linear_ae_kernel(%arg0: i32, %arg1: memref<8x1024xf32, #tpu.memory_space<vmem>>, %arg2: memref<1024x128xbf16, #tpu.memory_space<vmem>>, %arg3: memref<1x128xf32, #tpu.memory_space<vmem>>, %arg4: memref<128x64xbf16, #tpu.memory_space<vmem>>, %arg5: memref<1x64xf32, #tpu.memory_space<vmem>>, %arg6: memref<64x12xbf16, #tpu.memory_space<vmem>>, %arg7: memref<1x12xf32, #tpu.memory_space<vmem>>, %arg8: memref<12x12xbf16, #tpu.memory_space<vmem>>, %arg9: memref<1x12xf32, #tpu.memory_space<vmem>>, %arg10: memref<12x64xbf16, #tpu.memory_space<vmem>>, %arg11: memref<1x64xf32, #tpu.memory_space<vmem>>, %arg12: memref<64x128xbf16, #tpu.memory_space<vmem>>, %arg13: memref<1x128xf32, #tpu.memory_space<vmem>>, %arg14: memref<128x1024xbf16, #tpu.memory_space<vmem>>, %arg15: memref<1x1024xf32, #tpu.memory_space<vmem>>, %arg16: memref<8x1024xf32, #tpu.memory_space<vmem>>) attributes {dimension_semantics = [#tpu.dimension_semantics<parallel>], iteration_bounds = array<i64: 1>, scalar_prefetch = 0 : i64, scratch_operands = 0 : i64, tpu.core_type = #tpu.core_type<tc>, window_params = [{transform_indices = @transform_0, window_bounds = array<i64: 8, 1024>}, {pipeline_mode = #tpu.pipeline_mode<synchronous>, transform_indices = @transform_1, window_bounds = array<i64: 1024, 128>}, {pipeline_mode = #tpu.pipeline_mode<synchronous>, transform_indices = @transform_2, window_bounds = array<i64: 1, 128>}, {pipeline_mode = #tpu.pipeline_mode<synchronous>, transform_indices = @transform_3, window_bounds = array<i64: 128, 64>}, {pipeline_mode = #tpu.pipeline_mode<synchronous>, transform_indices = @transform_4, window_bounds = array<i64: 1, 64>}, {pipeline_mode = #tpu.pipeline_mode<synchronous>, transform_indices = @transform_5, window_bounds = array<i64: 64, 12>}, {pipeline_mode = #tpu.pipeline_mode<synchronous>, transform_indices = @transform_6, window_bounds = array<i64: 1, 12>}, {pipeline_mode = #tpu.pipeline_mode<synchronous>, transform_indices = @transform_7, window_bounds = array<i64: 12, 12>}, {pipeline_mode = #tpu.pipeline_mode<synchronous>, transform_indices = @transform_8, window_bounds = array<i64: 1, 12>}, {pipeline_mode = #tpu.pipeline_mode<synchronous>, transform_indices = @transform_9, window_bounds = array<i64: 12, 64>}, {pipeline_mode = #tpu.pipeline_mode<synchronous>, transform_indices = @transform_10, window_bounds = array<i64: 1, 64>}, {pipeline_mode = #tpu.pipeline_mode<synchronous>, transform_indices = @transform_11, window_bounds = array<i64: 64, 128>}, {pipeline_mode = #tpu.pipeline_mode<synchronous>, transform_indices = @transform_12, window_bounds = array<i64: 1, 128>}, {pipeline_mode = #tpu.pipeline_mode<synchronous>, transform_indices = @transform_13, window_bounds = array<i64: 128, 1024>}, {pipeline_mode = #tpu.pipeline_mode<synchronous>, transform_indices = @transform_14, window_bounds = array<i64: 1, 1024>}, {transform_indices = @transform_15, window_bounds = array<i64: 8, 1024>}]} {
    %c0 = arith.constant 0 : index
    %c0_0 = arith.constant 0 : index
    %0 = vector.load %arg1[%c0, %c0_0] : memref<8x1024xf32, #tpu.memory_space<vmem>>, vector<8x1024xf32>
    %1 = arith.truncf %0 : vector<8x1024xf32> to vector<8x1024xbf16>
    %c0_1 = arith.constant 0 : index
    %c0_2 = arith.constant 0 : index
    %2 = vector.load %arg2[%c0_1, %c0_2] : memref<1024x128xbf16, #tpu.memory_space<vmem>>, vector<1024x128xbf16>
    %cst = arith.constant dense<0.000000e+00> : vector<8x128xf32>
    %3 = tpu.matmul %1, %2, %cst {dimension_numbers = #tpu.dot_dimension_numbers<[1], [0], [0], [1], [0, 0, 1, 1], [], []>} : vector<8x1024xbf16>, vector<1024x128xbf16>, vector<8x128xf32> -> vector<8x128xf32>
    %c0_3 = arith.constant 0 : index
    %c0_4 = arith.constant 0 : index
    %4 = vector.load %arg3[%c0_3, %c0_4] : memref<1x128xf32, #tpu.memory_space<vmem>>, vector<1x128xf32>
    %5 = vector.broadcast %4 : vector<1x128xf32> to vector<8x128xf32>
    %6 = arith.addf %3, %5 : vector<8x128xf32>
    %cst_5 = arith.constant 0.000000e+00 : f32
    %7 = vector.broadcast %cst_5 : f32 to vector<8x128xf32>
    %8 = arith.maximumf %6, %7 : vector<8x128xf32>
    %9 = arith.truncf %8 : vector<8x128xf32> to vector<8x128xbf16>
    %c0_6 = arith.constant 0 : index
    %c0_7 = arith.constant 0 : index
    %10 = vector.load %arg4[%c0_6, %c0_7] : memref<128x64xbf16, #tpu.memory_space<vmem>>, vector<128x64xbf16>
    %cst_8 = arith.constant dense<0.000000e+00> : vector<8x64xf32>
    %11 = tpu.matmul %9, %10, %cst_8 {dimension_numbers = #tpu.dot_dimension_numbers<[1], [0], [0], [1], [0, 0, 1, 1], [], []>} : vector<8x128xbf16>, vector<128x64xbf16>, vector<8x64xf32> -> vector<8x64xf32>
    %c0_9 = arith.constant 0 : index
    %c0_10 = arith.constant 0 : index
    %12 = vector.load %arg5[%c0_9, %c0_10] : memref<1x64xf32, #tpu.memory_space<vmem>>, vector<1x64xf32>
    %13 = vector.broadcast %12 : vector<1x64xf32> to vector<8x64xf32>
    %14 = arith.addf %11, %13 : vector<8x64xf32>
    %cst_11 = arith.constant 0.000000e+00 : f32
    %15 = vector.broadcast %cst_11 : f32 to vector<8x64xf32>
    %16 = arith.maximumf %14, %15 : vector<8x64xf32>
    %17 = arith.truncf %16 : vector<8x64xf32> to vector<8x64xbf16>
    %c0_12 = arith.constant 0 : index
    %c0_13 = arith.constant 0 : index
    %18 = vector.load %arg6[%c0_12, %c0_13] : memref<64x12xbf16, #tpu.memory_space<vmem>>, vector<64x12xbf16>
    %cst_14 = arith.constant dense<0.000000e+00> : vector<8x12xf32>
    %19 = tpu.matmul %17, %18, %cst_14 {dimension_numbers = #tpu.dot_dimension_numbers<[1], [0], [0], [1], [0, 0, 1, 1], [], []>} : vector<8x64xbf16>, vector<64x12xbf16>, vector<8x12xf32> -> vector<8x12xf32>
    %c0_15 = arith.constant 0 : index
    %c0_16 = arith.constant 0 : index
    %20 = vector.load %arg7[%c0_15, %c0_16] : memref<1x12xf32, #tpu.memory_space<vmem>>, vector<1x12xf32>
    %21 = vector.broadcast %20 : vector<1x12xf32> to vector<8x12xf32>
    %22 = arith.addf %19, %21 : vector<8x12xf32>
    %cst_17 = arith.constant 0.000000e+00 : f32
    %23 = vector.broadcast %cst_17 : f32 to vector<8x12xf32>
    %24 = arith.maximumf %22, %23 : vector<8x12xf32>
    %25 = arith.truncf %24 : vector<8x12xf32> to vector<8x12xbf16>
    %c0_18 = arith.constant 0 : index
    %c0_19 = arith.constant 0 : index
    %26 = vector.load %arg8[%c0_18, %c0_19] : memref<12x12xbf16, #tpu.memory_space<vmem>>, vector<12x12xbf16>
    %cst_20 = arith.constant dense<0.000000e+00> : vector<8x12xf32>
    %27 = tpu.matmul %25, %26, %cst_20 {dimension_numbers = #tpu.dot_dimension_numbers<[1], [0], [0], [1], [0, 0, 1, 1], [], []>} : vector<8x12xbf16>, vector<12x12xbf16>, vector<8x12xf32> -> vector<8x12xf32>
    %c0_21 = arith.constant 0 : index
    %c0_22 = arith.constant 0 : index
    %28 = vector.load %arg9[%c0_21, %c0_22] : memref<1x12xf32, #tpu.memory_space<vmem>>, vector<1x12xf32>
    %29 = vector.broadcast %28 : vector<1x12xf32> to vector<8x12xf32>
    %30 = arith.addf %27, %29 : vector<8x12xf32>
    %cst_23 = arith.constant 0.000000e+00 : f32
    %31 = vector.broadcast %cst_23 : f32 to vector<8x12xf32>
    %32 = arith.maximumf %30, %31 : vector<8x12xf32>
    %33 = arith.truncf %32 : vector<8x12xf32> to vector<8x12xbf16>
    %c0_24 = arith.constant 0 : index
    %c0_25 = arith.constant 0 : index
    %34 = vector.load %arg10[%c0_24, %c0_25] : memref<12x64xbf16, #tpu.memory_space<vmem>>, vector<12x64xbf16>
    %cst_26 = arith.constant dense<0.000000e+00> : vector<8x64xf32>
    %35 = tpu.matmul %33, %34, %cst_26 {dimension_numbers = #tpu.dot_dimension_numbers<[1], [0], [0], [1], [0, 0, 1, 1], [], []>} : vector<8x12xbf16>, vector<12x64xbf16>, vector<8x64xf32> -> vector<8x64xf32>
    %c0_27 = arith.constant 0 : index
    %c0_28 = arith.constant 0 : index
    %36 = vector.load %arg11[%c0_27, %c0_28] : memref<1x64xf32, #tpu.memory_space<vmem>>, vector<1x64xf32>
    %37 = vector.broadcast %36 : vector<1x64xf32> to vector<8x64xf32>
    %38 = arith.addf %35, %37 : vector<8x64xf32>
    %cst_29 = arith.constant 0.000000e+00 : f32
    %39 = vector.broadcast %cst_29 : f32 to vector<8x64xf32>
    %40 = arith.maximumf %38, %39 : vector<8x64xf32>
    %41 = arith.truncf %40 : vector<8x64xf32> to vector<8x64xbf16>
    %c0_30 = arith.constant 0 : index
    %c0_31 = arith.constant 0 : index
    %42 = vector.load %arg12[%c0_30, %c0_31] : memref<64x128xbf16, #tpu.memory_space<vmem>>, vector<64x128xbf16>
    %cst_32 = arith.constant dense<0.000000e+00> : vector<8x128xf32>
    %43 = tpu.matmul %41, %42, %cst_32 {dimension_numbers = #tpu.dot_dimension_numbers<[1], [0], [0], [1], [0, 0, 1, 1], [], []>} : vector<8x64xbf16>, vector<64x128xbf16>, vector<8x128xf32> -> vector<8x128xf32>
    %c0_33 = arith.constant 0 : index
    %c0_34 = arith.constant 0 : index
    %44 = vector.load %arg13[%c0_33, %c0_34] : memref<1x128xf32, #tpu.memory_space<vmem>>, vector<1x128xf32>
    %45 = vector.broadcast %44 : vector<1x128xf32> to vector<8x128xf32>
    %46 = arith.addf %43, %45 : vector<8x128xf32>
    %cst_35 = arith.constant 0.000000e+00 : f32
    %47 = vector.broadcast %cst_35 : f32 to vector<8x128xf32>
    %48 = arith.maximumf %46, %47 : vector<8x128xf32>
    %49 = arith.truncf %48 : vector<8x128xf32> to vector<8x128xbf16>
    %c0_36 = arith.constant 0 : index
    %c0_37 = arith.constant 0 : index
    %50 = vector.load %arg14[%c0_36, %c0_37] : memref<128x1024xbf16, #tpu.memory_space<vmem>>, vector<128x1024xbf16>
    %cst_38 = arith.constant dense<0.000000e+00> : vector<8x1024xf32>
    %51 = tpu.matmul %49, %50, %cst_38 {dimension_numbers = #tpu.dot_dimension_numbers<[1], [0], [0], [1], [0, 0, 1, 1], [], []>} : vector<8x128xbf16>, vector<128x1024xbf16>, vector<8x1024xf32> -> vector<8x1024xf32>
    %c0_39 = arith.constant 0 : index
    %c0_40 = arith.constant 0 : index
    %52 = vector.load %arg15[%c0_39, %c0_40] : memref<1x1024xf32, #tpu.memory_space<vmem>>, vector<1x1024xf32>
    %53 = vector.broadcast %52 : vector<1x1024xf32> to vector<8x1024xf32>
    %54 = arith.addf %51, %53 : vector<8x1024xf32>
    %55 = math.tanh %54 : vector<8x1024xf32>
    %c0_41 = arith.constant 0 : index
    %c0_42 = arith.constant 0 : index
    %56 = vector.load %arg16[%c0_41, %c0_42] : memref<8x1024xf32, #tpu.memory_space<vmem>>, vector<8x1024xf32>
    tpu.vector_store %arg16[%c0_41, %c0_42], %55 {strides = array<i32>} : memref<8x1024xf32, #tpu.memory_space<vmem>>, vector<8x1024xf32>,
    return
  }
  func.func @transform_0(%arg0: i32) -> (i32, i32) {
    %c0_i32 = arith.constant 0 : i32
    %c0_i32_0 = arith.constant 0 : i32
    return %arg0, %c0_i32 : i32, i32
  }
  func.func @transform_1(%arg0: i32) -> (i32, i32) {
    %c0_i32 = arith.constant 0 : i32
    %c0_i32_0 = arith.constant 0 : i32
    %c0_i32_1 = arith.constant 0 : i32
    return %c0_i32, %c0_i32_0 : i32, i32
  }
  func.func @transform_2(%arg0: i32) -> (i32, i32) {
    %c0_i32 = arith.constant 0 : i32
    %c0_i32_0 = arith.constant 0 : i32
    %c0_i32_1 = arith.constant 0 : i32
    return %c0_i32, %c0_i32_0 : i32, i32
  }
  func.func @transform_3(%arg0: i32) -> (i32, i32) {
    %c0_i32 = arith.constant 0 : i32
    %c0_i32_0 = arith.constant 0 : i32
    %c0_i32_1 = arith.constant 0 : i32
    return %c0_i32, %c0_i32_0 : i32, i32
  }
  func.func @transform_4(%arg0: i32) -> (i32, i32) {
    %c0_i32 = arith.constant 0 : i32
    %c0_i32_0 = arith.constant 0 : i32
    %c0_i32_1 = arith.constant 0 : i32
    return %c0_i32, %c0_i32_0 : i32, i32
  }
  func.func @transform_5(%arg0: i32) -> (i32, i32) {
    %c0_i32 = arith.constant 0 : i32
    %c0_i32_0 = arith.constant 0 : i32
    %c0_i32_1 = arith.constant 0 : i32
    return %c0_i32, %c0_i32_0 : i32, i32
  }
  func.func @transform_6(%arg0: i32) -> (i32, i32) {
    %c0_i32 = arith.constant 0 : i32
    %c0_i32_0 = arith.constant 0 : i32
    %c0_i32_1 = arith.constant 0 : i32
    return %c0_i32, %c0_i32_0 : i32, i32
  }
  func.func @transform_7(%arg0: i32) -> (i32, i32) {
    %c0_i32 = arith.constant 0 : i32
    %c0_i32_0 = arith.constant 0 : i32
    %c0_i32_1 = arith.constant 0 : i32
    return %c0_i32, %c0_i32_0 : i32, i32
  }
  func.func @transform_8(%arg0: i32) -> (i32, i32) {
    %c0_i32 = arith.constant 0 : i32
    %c0_i32_0 = arith.constant 0 : i32
    %c0_i32_1 = arith.constant 0 : i32
    return %c0_i32, %c0_i32_0 : i32, i32
  }
  func.func @transform_9(%arg0: i32) -> (i32, i32) {
    %c0_i32 = arith.constant 0 : i32
    %c0_i32_0 = arith.constant 0 : i32
    %c0_i32_1 = arith.constant 0 : i32
    return %c0_i32, %c0_i32_0 : i32, i32
  }
  func.func @transform_10(%arg0: i32) -> (i32, i32) {
    %c0_i32 = arith.constant 0 : i32
    %c0_i32_0 = arith.constant 0 : i32
    %c0_i32_1 = arith.constant 0 : i32
    return %c0_i32, %c0_i32_0 : i32, i32
  }
  func.func @transform_11(%arg0: i32) -> (i32, i32) {
    %c0_i32 = arith.constant 0 : i32
    %c0_i32_0 = arith.constant 0 : i32
    %c0_i32_1 = arith.constant 0 : i32
    return %c0_i32, %c0_i32_0 : i32, i32
  }
  func.func @transform_12(%arg0: i32) -> (i32, i32) {
    %c0_i32 = arith.constant 0 : i32
    %c0_i32_0 = arith.constant 0 : i32
    %c0_i32_1 = arith.constant 0 : i32
    return %c0_i32, %c0_i32_0 : i32, i32
  }
  func.func @transform_13(%arg0: i32) -> (i32, i32) {
    %c0_i32 = arith.constant 0 : i32
    %c0_i32_0 = arith.constant 0 : i32
    %c0_i32_1 = arith.constant 0 : i32
    return %c0_i32, %c0_i32_0 : i32, i32
  }
  func.func @transform_14(%arg0: i32) -> (i32, i32) {
    %c0_i32 = arith.constant 0 : i32
    %c0_i32_0 = arith.constant 0 : i32
    %c0_i32_1 = arith.constant 0 : i32
    return %c0_i32, %c0_i32_0 : i32, i32
  }
  func.func @transform_15(%arg0: i32) -> (i32, i32) {
    %c0_i32 = arith.constant 0 : i32
    %c0_i32_0 = arith.constant 0 : i32
    return %arg0, %c0_i32 : i32, i32
  }
}

</mosaic_0001>

<llo_original>
// kernel: linear_ae_forward.1
$region0: #{linear_ae_forward.1}
  #allocation0 [shape = 'u32[]', space=smem, size = 0x4, offset = 0x4, fixed_abs, tag = 'smem constant byte address 0x4 - core index']
  #allocation1 [shape = 'u32[144,128]{1,0:T(1,128)}', space=vmem, size = 0x12000, scoped, tag = 'internal scratch']
  %s0 = inlined_call_operand.vmem [shape: f32[8,1024], index: 0, kind: input, shape index: {}]
  %s1 = inlined_call_operand.vmem [shape: bf16[1024,128], index: 1, kind: input, shape index: {}]
  %s2 = inlined_call_operand.vmem [shape: f32[1,128], index: 2, kind: input, shape index: {}]
  %s3 = inlined_call_operand.vmem [shape: bf16[128,64], index: 3, kind: input, shape index: {}]
  %s4 = inlined_call_operand.vmem [shape: f32[1,64], index: 4, kind: input, shape index: {}]
  %s5 = inlined_call_operand.vmem [shape: bf16[64,12], index: 5, kind: input, shape index: {}]
  %s6 = inlined_call_operand.vmem [shape: f32[1,12], index: 6, kind: input, shape index: {}]
  %s7 = inlined_call_operand.vmem [shape: bf16[12,12], index: 7, kind: input, shape index: {}]
  %s8 = inlined_call_operand.vmem [shape: f32[1,12], index: 8, kind: input, shape index: {}]
  %s9 = inlined_call_operand.vmem [shape: bf16[12,64], index: 9, kind: input, shape index: {}]
  %s10 = inlined_call_operand.vmem [shape: f32[1,64], index: 10, kind: input, shape index: {}]
  %s11 = inlined_call_operand.vmem [shape: bf16[64,128], index: 11, kind: input, shape index: {}]
  %s12 = inlined_call_operand.vmem [shape: f32[1,128], index: 12, kind: input, shape index: {}]
  %s13 = inlined_call_operand.vmem [shape: bf16[128,1024], index: 13, kind: input, shape index: {}]
  %s14 = inlined_call_operand.vmem [shape: f32[1,1024], index: 14, kind: input, shape index: {}]
  %s15 = inlined_call_operand.vmem [shape: f32[8,1024], index: 15, kind: output, shape index: {}]
  %s16 = sld [smem:[#allocation0]]
  $region70: #{linear_ae_forward.1} parent=0
    _
  %s18 = ssub.s32 1, %s16
  %s19 = scalar_select 0, %s18, %s16
  // Predicated region
  $region2: #{linear_ae_forward.1} parent=0 // pred_check
    _
  $region3: #{linear_ae_forward.1} parent=0 // pred_check_branch
    %21 = sbr.rel (0) target = $region5
  $region4: #{linear_ae_forward.1} parent=0 // pred_region
    _
  $region5: #{linear_ae_forward.1} parent=0 // pred_fallthru
    _
  // Predicated region
  $region6: #{linear_ae_forward.1} parent=0 // pred_check
    _
  $region7: #{linear_ae_forward.1} parent=0 // pred_check_branch
    %23 = sbr.rel (0) target = $region9
  $region8: #{linear_ae_forward.1} parent=0 // pred_region
    _
  $region9: #{linear_ae_forward.1} parent=0 // pred_fallthru
    _
  // Predicated region
  $region10: #{linear_ae_forward.1} parent=0 // pred_check
    _
  $region11: #{linear_ae_forward.1} parent=0 // pred_check_branch
    %25 = sbr.rel (0) target = $region13
  $region12: #{linear_ae_forward.1} parent=0 // pred_region
    _
  $region13: #{linear_ae_forward.1} parent=0 // pred_fallthru
    _
  // Predicated region
  $region14: #{linear_ae_forward.1} parent=0 // pred_check
    _
  $region15: #{linear_ae_forward.1} parent=0 // pred_check_branch
    %27 = sbr.rel (0) target = $region17
  $region16: #{linear_ae_forward.1} parent=0 // pred_region
    _
  $region17: #{linear_ae_forward.1} parent=0 // pred_fallthru
    _
  // Predicated region
  $region18: #{linear_ae_forward.1} parent=0 // pred_check
    _
  $region19: #{linear_ae_forward.1} parent=0 // pred_check_branch
    %29 = sbr.rel (0) target = $region21
  $region20: #{linear_ae_forward.1} parent=0 // pred_region
    _
  $region21: #{linear_ae_forward.1} parent=0 // pred_fallthru
    _
  // Predicated region
  $region22: #{linear_ae_forward.1} parent=0 // pred_check
    _
  $region23: #{linear_ae_forward.1} parent=0 // pred_check_branch
    %31 = sbr.rel (0) target = $region25
  $region24: #{linear_ae_forward.1} parent=0 // pred_region
    _
  $region25: #{linear_ae_forward.1} parent=0 // pred_fallthru
    _
  // Predicated region
  $region26: #{linear_ae_forward.1} parent=0 // pred_check
    _
  $region27: #{linear_ae_forward.1} parent=0 // pred_check_branch
    %33 = sbr.rel (0) target = $region29
  $region28: #{linear_ae_forward.1} parent=0 // pred_region
    _
  $region29: #{linear_ae_forward.1} parent=0 // pred_fallthru
    _
  // Predicated region
  $region30: #{linear_ae_forward.1} parent=0 // pred_check
    _
  $region31: #{linear_ae_forward.1} parent=0 // pred_check_branch
    %35 = sbr.rel (0) target = $region33
  $region32: #{linear_ae_forward.1} parent=0 // pred_region
    _
  $region33: #{linear_ae_forward.1} parent=0 // pred_fallthru
    _
  // Predicated region
  $region34: #{linear_ae_forward.1} parent=0 // pred_check
    _
  $region35: #{linear_ae_forward.1} parent=0 // pred_check_branch
    %37 = sbr.rel (0) target = $region37
  $region36: #{linear_ae_forward.1} parent=0 // pred_region
    _
  $region37: #{linear_ae_forward.1} parent=0 // pred_fallthru
    _
  // Predicated region
  $region38: #{linear_ae_forward.1} parent=0 // pred_check
    _
  $region39: #{linear_ae_forward.1} parent=0 // pred_check_branch
    %39 = sbr.rel (0) target = $region41
  $region40: #{linear_ae_forward.1} parent=0 // pred_region
    _
  $region41: #{linear_ae_forward.1} parent=0 // pred_fallthru
    _
  // Predicated region
  $region42: #{linear_ae_forward.1} parent=0 // pred_check
    _
  $region43: #{linear_ae_forward.1} parent=0 // pred_check_branch
    %41 = sbr.rel (0) target = $region45
  $region44: #{linear_ae_forward.1} parent=0 // pred_region
    _
  $region45: #{linear_ae_forward.1} parent=0 // pred_fallthru
    _
  // Predicated region
  $region46: #{linear_ae_forward.1} parent=0 // pred_check
    _
  $region47: #{linear_ae_forward.1} parent=0 // pred_check_branch
    %43 = sbr.rel (0) target = $region49
  $region48: #{linear_ae_forward.1} parent=0 // pred_region
    _
  $region49: #{linear_ae_forward.1} parent=0 // pred_fallthru
    _
  // Predicated region
  $region50: #{linear_ae_forward.1} parent=0 // pred_check
    _
  $region51: #{linear_ae_forward.1} parent=0 // pred_check_branch
    %45 = sbr.rel (0) target = $region53
  $region52: #{linear_ae_forward.1} parent=0 // pred_region
    _
  $region53: #{linear_ae_forward.1} parent=0 // pred_fallthru
    _
  // Predicated region
  $region54: #{linear_ae_forward.1} parent=0 // pred_check
    _
  $region55: #{linear_ae_forward.1} parent=0 // pred_check_branch
    %47 = sbr.rel (0) target = $region57
  $region56: #{linear_ae_forward.1} parent=0 // pred_region
    _
  $region57: #{linear_ae_forward.1} parent=0 // pred_fallthru
    _
  // Predicated region
  $region58: #{linear_ae_forward.1} parent=0 // pred_check
    _
  $region59: #{linear_ae_forward.1} parent=0 // pred_check_branch
    %49 = sbr.rel (0) target = $region61
  $region60: #{linear_ae_forward.1} parent=0 // pred_region
    _
  $region61: #{linear_ae_forward.1} parent=0 // pred_fallthru
    _
  %v51 = vld [vmem:[%s0] sm:$0xff]
  %v52 = vld [vmem:[%s0 + $0x8] sm:$0xff]
  %v53 = vld [vmem:[%s0 + $0x10] sm:$0xff]
  %v54 = vld [vmem:[%s0 + $0x18] sm:$0xff]
  %v55 = vld [vmem:[%s0 + $0x20] sm:$0xff]
  %v56 = vld [vmem:[%s0 + $0x28] sm:$0xff]
  %v57 = vld [vmem:[%s0 + $0x30] sm:$0xff]
  %v58 = vld [vmem:[%s0 + $0x38] sm:$0xff]
  %v59 = vpack.c.bf16 %v51, %v51
  %v60 = vpack.c.bf16 %v52, %v52
  %v61 = vpack.c.bf16 %v53, %v53
  %v62 = vpack.c.bf16 %v54, %v54
  %v63 = vpack.c.bf16 %v55, %v55
  %v64 = vpack.c.bf16 %v56, %v56
  %v65 = vpack.c.bf16 %v57, %v57
  %v66 = vpack.c.bf16 %v58, %v58
  %v67 = vld [vmem:[%s1] sm:$0xf]
  %v68 = vld [vmem:[%s1 + $0x4] sm:$0xf]
  %v69 = vld [vmem:[%s1 + $0x8] sm:$0xf]
  %v70 = vld [vmem:[%s1 + $0xc] sm:$0xf]
  %v71 = vld [vmem:[%s1 + $0x10] sm:$0xf]
  %v72 = vld [vmem:[%s1 + $0x14] sm:$0xf]
  %v73 = vld [vmem:[%s1 + $0x18] sm:$0xf]
  %v74 = vld [vmem:[%s1 + $0x1c] sm:$0xf]
  %v75 = vld [vmem:[%s1 + $0x20] sm:$0xf]
  %v76 = vld [vmem:[%s1 + $0x24] sm:$0xf]
  %v77 = vld [vmem:[%s1 + $0x28] sm:$0xf]
  %v78 = vld [vmem:[%s1 + $0x2c] sm:$0xf]
  %v79 = vld [vmem:[%s1 + $0x30] sm:$0xf]
  %v80 = vld [vmem:[%s1 + $0x34] sm:$0xf]
  %v81 = vld [vmem:[%s1 + $0x38] sm:$0xf]
  %v82 = vld [vmem:[%s1 + $0x3c] sm:$0xf]
  %v83 = vld [vmem:[%s1 + $0x40] sm:$0xf]
  %v84 = vld [vmem:[%s1 + $0x44] sm:$0xf]
  %v85 = vld [vmem:[%s1 + $0x48] sm:$0xf]
  %v86 = vld [vmem:[%s1 + $0x4c] sm:$0xf]
  %v87 = vld [vmem:[%s1 + $0x50] sm:$0xf]
  %v88 = vld [vmem:[%s1 + $0x54] sm:$0xf]
  %v89 = vld [vmem:[%s1 + $0x58] sm:$0xf]
  %v90 = vld [vmem:[%s1 + $0x5c] sm:$0xf]
  %v91 = vld [vmem:[%s1 + $0x60] sm:$0xf]
  %v92 = vld [vmem:[%s1 + $0x64] sm:$0xf]
  %v93 = vld [vmem:[%s1 + $0x68] sm:$0xf]
  %v94 = vld [vmem:[%s1 + $0x6c] sm:$0xf]
  %v95 = vld [vmem:[%s1 + $0x70] sm:$0xf]
  %v96 = vld [vmem:[%s1 + $0x74] sm:$0xf]
  %v97 = vld [vmem:[%s1 + $0x78] sm:$0xf]
  %v98 = vld [vmem:[%s1 + $0x7c] sm:$0xf]
  %v99 = vld [vmem:[%s1 + $0x80] sm:$0xf]
  %v100 = vld [vmem:[%s1 + $0x84] sm:$0xf]
  %v101 = vld [vmem:[%s1 + $0x88] sm:$0xf]
  %v102 = vld [vmem:[%s1 + $0x8c] sm:$0xf]
  %v103 = vld [vmem:[%s1 + $0x90] sm:$0xf]
  %v104 = vld [vmem:[%s1 + $0x94] sm:$0xf]
  %v105 = vld [vmem:[%s1 + $0x98] sm:$0xf]
  %v106 = vld [vmem:[%s1 + $0x9c] sm:$0xf]
  %v107 = vld [vmem:[%s1 + $0xa0] sm:$0xf]
  %v108 = vld [vmem:[%s1 + $0xa4] sm:$0xf]
  %v109 = vld [vmem:[%s1 + $0xa8] sm:$0xf]
  %v110 = vld [vmem:[%s1 + $0xac] sm:$0xf]
  %v111 = vld [vmem:[%s1 + $0xb0] sm:$0xf]
  %v112 = vld [vmem:[%s1 + $0xb4] sm:$0xf]
  %v113 = vld [vmem:[%s1 + $0xb8] sm:$0xf]
  %v114 = vld [vmem:[%s1 + $0xbc] sm:$0xf]
  %v115 = vld [vmem:[%s1 + $0xc0] sm:$0xf]
  %v116 = vld [vmem:[%s1 + $0xc4] sm:$0xf]
  %v117 = vld [vmem:[%s1 + $0xc8] sm:$0xf]
  %v118 = vld [vmem:[%s1 + $0xcc] sm:$0xf]
  %v119 = vld [vmem:[%s1 + $0xd0] sm:$0xf]
  %v120 = vld [vmem:[%s1 + $0xd4] sm:$0xf]
  %v121 = vld [vmem:[%s1 + $0xd8] sm:$0xf]
  %v122 = vld [vmem:[%s1 + $0xdc] sm:$0xf]
  %v123 = vld [vmem:[%s1 + $0xe0] sm:$0xf]
  %v124 = vld [vmem:[%s1 + $0xe4] sm:$0xf]
  %v125 = vld [vmem:[%s1 + $0xe8] sm:$0xf]
  %v126 = vld [vmem:[%s1 + $0xec] sm:$0xf]
  %v127 = vld [vmem:[%s1 + $0xf0] sm:$0xf]
  %v128 = vld [vmem:[%s1 + $0xf4] sm:$0xf]
  %v129 = vld [vmem:[%s1 + $0xf8] sm:$0xf]
  %v130 = vld [vmem:[%s1 + $0xfc] sm:$0xf]
  %v131 = vld [vmem:[%s1 + $0x100] sm:$0xf]
  %v132 = vld [vmem:[%s1 + $0x104] sm:$0xf]
  %v133 = vld [vmem:[%s1 + $0x108] sm:$0xf]
  %v134 = vld [vmem:[%s1 + $0x10c] sm:$0xf]
  %v135 = vld [vmem:[%s1 + $0x110] sm:$0xf]
  %v136 = vld [vmem:[%s1 + $0x114] sm:$0xf]
  %v137 = vld [vmem:[%s1 + $0x118] sm:$0xf]
  %v138 = vld [vmem:[%s1 + $0x11c] sm:$0xf]
  %v139 = vld [vmem:[%s1 + $0x120] sm:$0xf]
  %v140 = vld [vmem:[%s1 + $0x124] sm:$0xf]
  %v141 = vld [vmem:[%s1 + $0x128] sm:$0xf]
  %v142 = vld [vmem:[%s1 + $0x12c] sm:$0xf]
  %v143 = vld [vmem:[%s1 + $0x130] sm:$0xf]
  %v144 = vld [vmem:[%s1 + $0x134] sm:$0xf]
  %v145 = vld [vmem:[%s1 + $0x138] sm:$0xf]
  %v146 = vld [vmem:[%s1 + $0x13c] sm:$0xf]
  %v147 = vld [vmem:[%s1 + $0x140] sm:$0xf]
  %v148 = vld [vmem:[%s1 + $0x144] sm:$0xf]
  %v149 = vld [vmem:[%s1 + $0x148] sm:$0xf]
  %v150 = vld [vmem:[%s1 + $0x14c] sm:$0xf]
  %v151 = vld [vmem:[%s1 + $0x150] sm:$0xf]
  %v152 = vld [vmem:[%s1 + $0x154] sm:$0xf]
  %v153 = vld [vmem:[%s1 + $0x158] sm:$0xf]
  %v154 = vld [vmem:[%s1 + $0x15c] sm:$0xf]
  %v155 = vld [vmem:[%s1 + $0x160] sm:$0xf]
  %v156 = vld [vmem:[%s1 + $0x164] sm:$0xf]
  %v157 = vld [vmem:[%s1 + $0x168] sm:$0xf]
  %v158 = vld [vmem:[%s1 + $0x16c] sm:$0xf]
  %v159 = vld [vmem:[%s1 + $0x170] sm:$0xf]
  %v160 = vld [vmem:[%s1 + $0x174] sm:$0xf]
  %v161 = vld [vmem:[%s1 + $0x178] sm:$0xf]
  %v162 = vld [vmem:[%s1 + $0x17c] sm:$0xf]
  %v163 = vld [vmem:[%s1 + $0x180] sm:$0xf]
  %v164 = vld [vmem:[%s1 + $0x184] sm:$0xf]
  %v165 = vld [vmem:[%s1 + $0x188] sm:$0xf]
  %v166 = vld [vmem:[%s1 + $0x18c] sm:$0xf]
  %v167 = vld [vmem:[%s1 + $0x190] sm:$0xf]
  %v168 = vld [vmem:[%s1 + $0x194] sm:$0xf]
  %v169 = vld [vmem:[%s1 + $0x198] sm:$0xf]
  %v170 = vld [vmem:[%s1 + $0x19c] sm:$0xf]
  %v171 = vld [vmem:[%s1 + $0x1a0] sm:$0xf]
  %v172 = vld [vmem:[%s1 + $0x1a4] sm:$0xf]
  %v173 = vld [vmem:[%s1 + $0x1a8] sm:$0xf]
  %v174 = vld [vmem:[%s1 + $0x1ac] sm:$0xf]
  %v175 = vld [vmem:[%s1 + $0x1b0] sm:$0xf]
  %v176 = vld [vmem:[%s1 + $0x1b4] sm:$0xf]
  %v177 = vld [vmem:[%s1 + $0x1b8] sm:$0xf]
  %v178 = vld [vmem:[%s1 + $0x1bc] sm:$0xf]
  %v179 = vld [vmem:[%s1 + $0x1c0] sm:$0xf]
  %v180 = vld [vmem:[%s1 + $0x1c4] sm:$0xf]
  %v181 = vld [vmem:[%s1 + $0x1c8] sm:$0xf]
  %v182 = vld [vmem:[%s1 + $0x1cc] sm:$0xf]
  %v183 = vld [vmem:[%s1 + $0x1d0] sm:$0xf]
  %v184 = vld [vmem:[%s1 + $0x1d4] sm:$0xf]
  %v185 = vld [vmem:[%s1 + $0x1d8] sm:$0xf]
  %v186 = vld [vmem:[%s1 + $0x1dc] sm:$0xf]
  %v187 = vld [vmem:[%s1 + $0x1e0] sm:$0xf]
  %v188 = vld [vmem:[%s1 + $0x1e4] sm:$0xf]
  %v189 = vld [vmem:[%s1 + $0x1e8] sm:$0xf]
  %v190 = vld [vmem:[%s1 + $0x1ec] sm:$0xf]
  %v191 = vld [vmem:[%s1 + $0x1f0] sm:$0xf]
  %v192 = vld [vmem:[%s1 + $0x1f4] sm:$0xf]
  %v193 = vld [vmem:[%s1 + $0x1f8] sm:$0xf]
  %v194 = vld [vmem:[%s1 + $0x1fc] sm:$0xf]
  %v195 = vld [vmem:[%s2] sm:$0x1]
  %v197 = vlaneseq
  %v198 = vshrl.u32 %v197, 7
  %v199 = vsub.s32 0, %v198
  %v200 = vrot.slane %v195, %v199
  %v330 = vunpack.c.l.b16 %v67
  %v331 = vunpack.c.l.b16 %v68
  %v332 = vunpack.c.l.b16 %v69
  %v333 = vunpack.c.l.b16 %v70
  %v334 = vunpack.c.l.b16 %v71
  %v335 = vunpack.c.l.b16 %v72
  %v336 = vunpack.c.l.b16 %v73
  %v337 = vunpack.c.l.b16 %v74
  %v338 = vunpack.c.l.b16 %v75
  %v339 = vunpack.c.l.b16 %v76
  %v340 = vunpack.c.l.b16 %v77
  %v341 = vunpack.c.l.b16 %v78
  %v342 = vunpack.c.l.b16 %v79
  %v343 = vunpack.c.l.b16 %v80
  %v344 = vunpack.c.l.b16 %v81
  %v345 = vunpack.c.l.b16 %v82
  %v346 = vunpack.c.l.b16 %v83
  %v347 = vunpack.c.l.b16 %v84
  %v348 = vunpack.c.l.b16 %v85
  %v349 = vunpack.c.l.b16 %v86
  %v350 = vunpack.c.l.b16 %v87
  %v351 = vunpack.c.l.b16 %v88
  %v352 = vunpack.c.l.b16 %v89
  %v353 = vunpack.c.l.b16 %v90
  %v354 = vunpack.c.l.b16 %v91
  %v355 = vunpack.c.l.b16 %v92
  %v356 = vunpack.c.l.b16 %v93
  %v357 = vunpack.c.l.b16 %v94
  %v358 = vunpack.c.l.b16 %v95
  %v359 = vunpack.c.l.b16 %v96
  %v360 = vunpack.c.l.b16 %v97
  %v361 = vunpack.c.l.b16 %v98
  %v362 = vunpack.c.l.b16 %v99
  %v363 = vunpack.c.l.b16 %v100
  %v364 = vunpack.c.l.b16 %v101
  %v365 = vunpack.c.l.b16 %v102
  %v366 = vunpack.c.l.b16 %v103
  %v367 = vunpack.c.l.b16 %v104
  %v368 = vunpack.c.l.b16 %v105
  %v369 = vunpack.c.l.b16 %v106
  %v370 = vunpack.c.l.b16 %v107
  %v371 = vunpack.c.l.b16 %v108
  %v372 = vunpack.c.l.b16 %v109
  %v373 = vunpack.c.l.b16 %v110
  %v374 = vunpack.c.l.b16 %v111
  %v375 = vunpack.c.l.b16 %v112
  %v376 = vunpack.c.l.b16 %v113
  %v377 = vunpack.c.l.b16 %v114
  %v378 = vunpack.c.l.b16 %v115
  %v379 = vunpack.c.l.b16 %v116
  %v380 = vunpack.c.l.b16 %v117
  %v381 = vunpack.c.l.b16 %v118
  %v382 = vunpack.c.l.b16 %v119
  %v383 = vunpack.c.l.b16 %v120
  %v384 = vunpack.c.l.b16 %v121
  %v385 = vunpack.c.l.b16 %v122
  %v386 = vunpack.c.l.b16 %v123
  %v387 = vunpack.c.l.b16 %v124
  %v388 = vunpack.c.l.b16 %v125
  %v389 = vunpack.c.l.b16 %v126
  %v390 = vunpack.c.l.b16 %v127
  %v391 = vunpack.c.l.b16 %v128
  %v392 = vunpack.c.l.b16 %v129
  %v393 = vunpack.c.l.b16 %v130
  %v394 = vunpack.c.l.b16 %v131
  %v395 = vunpack.c.l.b16 %v132
  %v396 = vunpack.c.l.b16 %v133
  %v397 = vunpack.c.l.b16 %v134
  %v398 = vunpack.c.l.b16 %v135
  %v399 = vunpack.c.l.b16 %v136
  %v400 = vunpack.c.l.b16 %v137
  %v401 = vunpack.c.l.b16 %v138
  %v402 = vunpack.c.l.b16 %v139
  %v403 = vunpack.c.l.b16 %v140
  %v404 = vunpack.c.l.b16 %v141
  %v405 = vunpack.c.l.b16 %v142
  %v406 = vunpack.c.l.b16 %v143
  %v407 = vunpack.c.l.b16 %v144
  %v408 = vunpack.c.l.b16 %v145
  %v409 = vunpack.c.l.b16 %v146
  %v410 = vunpack.c.l.b16 %v147
  %v411 = vunpack.c.l.b16 %v148
  %v412 = vunpack.c.l.b16 %v149
  %v413 = vunpack.c.l.b16 %v150
  %v414 = vunpack.c.l.b16 %v151
  %v415 = vunpack.c.l.b16 %v152
  %v416 = vunpack.c.l.b16 %v153
  %v417 = vunpack.c.l.b16 %v154
  %v418 = vunpack.c.l.b16 %v155
  %v419 = vunpack.c.l.b16 %v156
  %v420 = vunpack.c.l.b16 %v157
  %v421 = vunpack.c.l.b16 %v158
  %v422 = vunpack.c.l.b16 %v159
  %v423 = vunpack.c.l.b16 %v160
  %v424 = vunpack.c.l.b16 %v161
  %v425 = vunpack.c.l.b16 %v162
  %v426 = vunpack.c.l.b16 %v163
  %v427 = vunpack.c.l.b16 %v164
  %v428 = vunpack.c.l.b16 %v165
  %v429 = vunpack.c.l.b16 %v166
  %v430 = vunpack.c.l.b16 %v167
  %v431 = vunpack.c.l.b16 %v168
  %v432 = vunpack.c.l.b16 %v169
  %v433 = vunpack.c.l.b16 %v170
  %v434 = vunpack.c.l.b16 %v171
  %v435 = vunpack.c.l.b16 %v172
  %v436 = vunpack.c.l.b16 %v173
  %v437 = vunpack.c.l.b16 %v174
  %v438 = vunpack.c.l.b16 %v175
  %v439 = vunpack.c.l.b16 %v176
  %v440 = vunpack.c.l.b16 %v177
  %v441 = vunpack.c.l.b16 %v178
  %v442 = vunpack.c.l.b16 %v179
  %v443 = vunpack.c.l.b16 %v180
  %v444 = vunpack.c.l.b16 %v181
  %v445 = vunpack.c.l.b16 %v182
  %v446 = vunpack.c.l.b16 %v183
  %v447 = vunpack.c.l.b16 %v184
  %v448 = vunpack.c.l.b16 %v185
  %v449 = vunpack.c.l.b16 %v186
  %v450 = vunpack.c.l.b16 %v187
  %v451 = vunpack.c.l.b16 %v188
  %v452 = vunpack.c.l.b16 %v189
  %v453 = vunpack.c.l.b16 %v190
  %v454 = vunpack.c.l.b16 %v191
  %v455 = vunpack.c.l.b16 %v192
  %v456 = vunpack.c.l.b16 %v193
  %v457 = vunpack.c.l.b16 %v194
  %v458 = vpack.c.b16 %v331, %v330
  %v459 = vpack.c.b16 %v333, %v332
  %v460 = vpack.c.b16 %v335, %v334
  %v461 = vpack.c.b16 %v337, %v336
  %v462 = vpack.c.b16 %v339, %v338
  %v463 = vpack.c.b16 %v341, %v340
  %v464 = vpack.c.b16 %v343, %v342
  %v465 = vpack.c.b16 %v345, %v344
  %v466 = vpack.c.b16 %v347, %v346
  %v467 = vpack.c.b16 %v349, %v348
  %v468 = vpack.c.b16 %v351, %v350
  %v469 = vpack.c.b16 %v353, %v352
  %v470 = vpack.c.b16 %v355, %v354
  %v471 = vpack.c.b16 %v357, %v356
  %v472 = vpack.c.b16 %v359, %v358
  %v473 = vpack.c.b16 %v361, %v360
  %v474 = vpack.c.b16 %v363, %v362
  %v475 = vpack.c.b16 %v365, %v364
  %v476 = vpack.c.b16 %v367, %v366
  %v477 = vpack.c.b16 %v369, %v368
  %v478 = vpack.c.b16 %v371, %v370
  %v479 = vpack.c.b16 %v373, %v372
  %v480 = vpack.c.b16 %v375, %v374
  %v481 = vpack.c.b16 %v377, %v376
  %v482 = vpack.c.b16 %v379, %v378
  %v483 = vpack.c.b16 %v381, %v380
  %v484 = vpack.c.b16 %v383, %v382
  %v485 = vpack.c.b16 %v385, %v384
  %v486 = vpack.c.b16 %v387, %v386
  %v487 = vpack.c.b16 %v389, %v388
  %v488 = vpack.c.b16 %v391, %v390
  %v489 = vpack.c.b16 %v393, %v392
  %v490 = vpack.c.b16 %v395, %v394
  %v491 = vpack.c.b16 %v397, %v396
  %v492 = vpack.c.b16 %v399, %v398
  %v493 = vpack.c.b16 %v401, %v400
  %v494 = vpack.c.b16 %v403, %v402
  %v495 = vpack.c.b16 %v405, %v404
  %v496 = vpack.c.b16 %v407, %v406
  %v497 = vpack.c.b16 %v409, %v408
  %v498 = vpack.c.b16 %v411, %v410
  %v499 = vpack.c.b16 %v413, %v412
  %v500 = vpack.c.b16 %v415, %v414
  %v501 = vpack.c.b16 %v417, %v416
  %v502 = vpack.c.b16 %v419, %v418
  %v503 = vpack.c.b16 %v421, %v420
  %v504 = vpack.c.b16 %v423, %v422
  %v505 = vpack.c.b16 %v425, %v424
  %v506 = vpack.c.b16 %v427, %v426
  %v507 = vpack.c.b16 %v429, %v428
  %v508 = vpack.c.b16 %v431, %v430
  %v509 = vpack.c.b16 %v433, %v432
  %v510 = vpack.c.b16 %v435, %v434
  %v511 = vpack.c.b16 %v437, %v436
  %v512 = vpack.c.b16 %v439, %v438
  %v513 = vpack.c.b16 %v441, %v440
  %v514 = vpack.c.b16 %v443, %v442
  %v515 = vpack.c.b16 %v445, %v444
  %v516 = vpack.c.b16 %v447, %v446
  %v517 = vpack.c.b16 %v449, %v448
  %v518 = vpack.c.b16 %v451, %v450
  %v519 = vpack.c.b16 %v453, %v452
  %v520 = vpack.c.b16 %v455, %v454
  %v521 = vpack.c.b16 %v457, %v456
  %586 = vmatprep.subr.bf16.mxu0 0
  %587 = vmatpush1.bf16.msra.mxu0 %v458
  %588 = vmatprep.subr.bf16.mxu0 0
  %589 = vmatpush1.bf16.msra.mxu0 %v459
  %590 = vmatprep.subr.bf16.mxu0 0
  %591 = vmatpush1.bf16.msra.mxu0 %v460
  %592 = vmatprep.subr.bf16.mxu0 0
  %593 = vmatpush1.bf16.msra.mxu0 %v461
  %594 = vmatprep.subr.bf16.mxu0 0
  %595 = vmatpush1.bf16.msra.mxu0 %v462
  %596 = vmatprep.subr.bf16.mxu0 0
  %597 = vmatpush1.bf16.msra.mxu0 %v463
  %598 = vmatprep.subr.bf16.mxu0 0
  %599 = vmatpush1.bf16.msra.mxu0 %v464
  %600 = vmatprep.subr.bf16.mxu0 0
  %601 = vmatpush1.bf16.msra.mxu0 %v465
  %602 = vmatprep.subr.bf16.mxu0 0
  %603 = vmatpush1.bf16.msra.mxu0 %v466
  %604 = vmatprep.subr.bf16.mxu0 0
  %605 = vmatpush1.bf16.msra.mxu0 %v467
  %606 = vmatprep.subr.bf16.mxu0 0
  %607 = vmatpush1.bf16.msra.mxu0 %v468
  %608 = vmatprep.subr.bf16.mxu0 0
  %609 = vmatpush1.bf16.msra.mxu0 %v469
  %610 = vmatprep.subr.bf16.mxu0 0
  %611 = vmatpush1.bf16.msra.mxu0 %v470
  %612 = vmatprep.subr.bf16.mxu0 0
  %613 = vmatpush1.bf16.msra.mxu0 %v471
  %614 = vmatprep.subr.bf16.mxu0 0
  %615 = vmatpush1.bf16.msra.mxu0 %v472
  %616 = vmatprep.subr.bf16.mxu0 0
  %617 = vmatpush1.bf16.msra.mxu0 %v473
  %618 = vmatprep.mubr.bf16.mxu0 %v60
  %619 = vmatmul.mubr.bf16.gmra.mrb[0].mxu0 %v59
  %v620 = vpop.f32.mrb[0].mxu0
  %v621 = vadd.f32 %v200, %v620
  %v622 = vpop.f32.mrb[0].mxu0
  %v623 = vpop.f32.mrb[0].mxu0
  %v624 = vpop.f32.mrb[0].mxu0
  %625 = vdwg.mxu0
  %626 = vmatprep.subr.bf16.mxu0 0
  %627 = vmatpush1.bf16.msra.mxu0 %v474
  %628 = vmatprep.subr.bf16.mxu0 0
  %629 = vmatpush1.bf16.msra.mxu0 %v475
  %630 = vmatprep.subr.bf16.mxu0 0
  %631 = vmatpush1.bf16.msra.mxu0 %v476
  %632 = vmatprep.subr.bf16.mxu0 0
  %633 = vmatpush1.bf16.msra.mxu0 %v477
  %634 = vmatprep.subr.bf16.mxu0 0
  %635 = vmatpush1.bf16.msra.mxu0 %v478
  %636 = vmatprep.subr.bf16.mxu0 0
  %637 = vmatpush1.bf16.msra.mxu0 %v479
  %638 = vmatprep.subr.bf16.mxu0 0
  %639 = vmatpush1.bf16.msra.mxu0 %v480
  %640 = vmatprep.subr.bf16.mxu0 0
  %641 = vmatpush1.bf16.msra.mxu0 %v481
  %642 = vmatprep.subr.bf16.mxu0 0
  %643 = vmatpush1.bf16.msra.mxu0 %v482
  %644 = vmatprep.subr.bf16.mxu0 0
  %645 = vmatpush1.bf16.msra.mxu0 %v483
  %646 = vmatprep.subr.bf16.mxu0 0
  %647 = vmatpush1.bf16.msra.mxu0 %v484
  %648 = vmatprep.subr.bf16.mxu0 0
  %649 = vmatpush1.bf16.msra.mxu0 %v485
  %650 = vmatprep.subr.bf16.mxu0 0
  %651 = vmatpush1.bf16.msra.mxu0 %v486
  %652 = vmatprep.subr.bf16.mxu0 0
  %653 = vmatpush1.bf16.msra.mxu0 %v487
  %654 = vmatprep.subr.bf16.mxu0 0
  %655 = vmatpush1.bf16.msra.mxu0 %v488
  %656 = vmatprep.subr.bf16.mxu0 0
  %657 = vmatpush1.bf16.msra.mxu0 %v489
  %658 = vmatprep.mubr.bf16.mxu0 %v62
  %659 = vmatmul.mubr.bf16.gmra.mrb[0].mxu0 %v61
  %v660 = vpop.f32.mrb[0].mxu0
  %v661 = vadd.f32 %v621, %v660
  %v662 = vpop.f32.mrb[0].mxu0
  %v663 = vpop.f32.mrb[0].mxu0
  %v664 = vpop.f32.mrb[0].mxu0
  %665 = vdwg.mxu0
  %666 = vmatprep.subr.bf16.mxu0 0
  %667 = vmatpush1.bf16.msra.mxu0 %v490
  %668 = vmatprep.subr.bf16.mxu0 0
  %669 = vmatpush1.bf16.msra.mxu0 %v491
  %670 = vmatprep.subr.bf16.mxu0 0
  %671 = vmatpush1.bf16.msra.mxu0 %v492
  %672 = vmatprep.subr.bf16.mxu0 0
  %673 = vmatpush1.bf16.msra.mxu0 %v493
  %674 = vmatprep.subr.bf16.mxu0 0
  %675 = vmatpush1.bf16.msra.mxu0 %v494
  %676 = vmatprep.subr.bf16.mxu0 0
  %677 = vmatpush1.bf16.msra.mxu0 %v495
  %678 = vmatprep.subr.bf16.mxu0 0
  %679 = vmatpush1.bf16.msra.mxu0 %v496
  %680 = vmatprep.subr.bf16.mxu0 0
  %681 = vmatpush1.bf16.msra.mxu0 %v497
  %682 = vmatprep.subr.bf16.mxu0 0
  %683 = vmatpush1.bf16.msra.mxu0 %v498
  %684 = vmatprep.subr.bf16.mxu0 0
  %685 = vmatpush1.bf16.msra.mxu0 %v499
  %686 = vmatprep.subr.bf16.mxu0 0
  %687 = vmatpush1.bf16.msra.mxu0 %v500
  %688 = vmatprep.subr.bf16.mxu0 0
  %689 = vmatpush1.bf16.msra.mxu0 %v501
  %690 = vmatprep.subr.bf16.mxu0 0
  %691 = vmatpush1.bf16.msra.mxu0 %v502
  %692 = vmatprep.subr.bf16.mxu0 0
  %693 = vmatpush1.bf16.msra.mxu0 %v503
  %694 = vmatprep.subr.bf16.mxu0 0
  %695 = vmatpush1.bf16.msra.mxu0 %v504
  %696 = vmatprep.subr.bf16.mxu0 0
  %697 = vmatpush1.bf16.msra.mxu0 %v505
  %698 = vmatprep.mubr.bf16.mxu0 %v64
  %699 = vmatmul.mubr.bf16.gmra.mrb[0].mxu0 %v63
  %v700 = vpop.f32.mrb[0].mxu0
  %v701 = vadd.f32 %v661, %v700
  %v702 = vpop.f32.mrb[0].mxu0
  %v703 = vpop.f32.mrb[0].mxu0
  %v704 = vpop.f32.mrb[0].mxu0
  %705 = vdwg.mxu0
  %706 = vmatprep.subr.bf16.mxu0 0
  %707 = vmatpush1.bf16.msra.mxu0 %v506
  %708 = vmatprep.subr.bf16.mxu0 0
  %709 = vmatpush1.bf16.msra.mxu0 %v507
  %710 = vmatprep.subr.bf16.mxu0 0
  %711 = vmatpush1.bf16.msra.mxu0 %v508
  %712 = vmatprep.subr.bf16.mxu0 0
  %713 = vmatpush1.bf16.msra.mxu0 %v509
  %714 = vmatprep.subr.bf16.mxu0 0
  %715 = vmatpush1.bf16.msra.mxu0 %v510
  %716 = vmatprep.subr.bf16.mxu0 0
  %717 = vmatpush1.bf16.msra.mxu0 %v511
  %718 = vmatprep.subr.bf16.mxu0 0
  %719 = vmatpush1.bf16.msra.mxu0 %v512
  %720 = vmatprep.subr.bf16.mxu0 0
  %721 = vmatpush1.bf16.msra.mxu0 %v513
  %722 = vmatprep.subr.bf16.mxu0 0
  %723 = vmatpush1.bf16.msra.mxu0 %v514
  %724 = vmatprep.subr.bf16.mxu0 0
  %725 = vmatpush1.bf16.msra.mxu0 %v515
  %726 = vmatprep.subr.bf16.mxu0 0
  %727 = vmatpush1.bf16.msra.mxu0 %v516
  %728 = vmatprep.subr.bf16.mxu0 0
  %729 = vmatpush1.bf16.msra.mxu0 %v517
  %730 = vmatprep.subr.bf16.mxu0 0
  %731 = vmatpush1.bf16.msra.mxu0 %v518
  %732 = vmatprep.subr.bf16.mxu0 0
  %733 = vmatpush1.bf16.msra.mxu0 %v519
  %734 = vmatprep.subr.bf16.mxu0 0
  %735 = vmatpush1.bf16.msra.mxu0 %v520
  %736 = vmatprep.subr.bf16.mxu0 0
  %737 = vmatpush1.bf16.msra.mxu0 %v521
  %738 = vmatprep.mubr.bf16.mxu0 %v66
  %739 = vmatmul.mubr.bf16.gmra.mrb[0].mxu0 %v65
  %v740 = vpop.f32.mrb[0].mxu0
  %v741 = vadd.f32 %v701, %v740
  %v742 = vpop.f32.mrb[0].mxu0
  %v743 = vpop.f32.mrb[0].mxu0
  %v744 = vpop.f32.mrb[0].mxu0
  %745 = vdwg.mxu0
  %v746 = vmax.f32 %v741, 0.0
  %v747 = vpack.c.bf16 %v746, %v746
  %v748 = vld [vmem:[%s3] sm:$0xf]
  %v749 = vld [vmem:[%s3 + $0x4] sm:$0xf]
  %v750 = vld [vmem:[%s3 + $0x8] sm:$0xf]
  %v751 = vld [vmem:[%s3 + $0xc] sm:$0xf]
  %v752 = vld [vmem:[%s3 + $0x10] sm:$0xf]
  %v753 = vld [vmem:[%s3 + $0x14] sm:$0xf]
  %v754 = vld [vmem:[%s3 + $0x18] sm:$0xf]
  %v755 = vld [vmem:[%s3 + $0x1c] sm:$0xf]
  %v756 = vld [vmem:[%s3 + $0x20] sm:$0xf]
  %v757 = vld [vmem:[%s3 + $0x24] sm:$0xf]
  %v758 = vld [vmem:[%s3 + $0x28] sm:$0xf]
  %v759 = vld [vmem:[%s3 + $0x2c] sm:$0xf]
  %v760 = vld [vmem:[%s3 + $0x30] sm:$0xf]
  %v761 = vld [vmem:[%s3 + $0x34] sm:$0xf]
  %v762 = vld [vmem:[%s3 + $0x38] sm:$0xf]
  %v763 = vld [vmem:[%s3 + $0x3c] sm:$0xf]
  %v764 = vld [vmem:[%s4] sm:$0x1]
  %v766 = vlaneseq
  %v767 = vshrl.u32 %v766, 7
  %v768 = vsub.s32 0, %v767
  %v769 = vrot.slane %v764, %v768
  %v787 = vunpack.c.l.b16 %v748
  %v788 = vunpack.c.l.b16 %v749
  %v789 = vunpack.c.l.b16 %v750
  %v790 = vunpack.c.l.b16 %v751
  %v791 = vunpack.c.l.b16 %v752
  %v792 = vunpack.c.l.b16 %v753
  %v793 = vunpack.c.l.b16 %v754
  %v794 = vunpack.c.l.b16 %v755
  %v795 = vunpack.c.l.b16 %v756
  %v796 = vunpack.c.l.b16 %v757
  %v797 = vunpack.c.l.b16 %v758
  %v798 = vunpack.c.l.b16 %v759
  %v799 = vunpack.c.l.b16 %v760
  %v800 = vunpack.c.l.b16 %v761
  %v801 = vunpack.c.l.b16 %v762
  %v802 = vunpack.c.l.b16 %v763
  %v803 = vpack.c.b16 %v788, %v787
  %v804 = vpack.c.b16 %v790, %v789
  %v805 = vpack.c.b16 %v792, %v791
  %v806 = vpack.c.b16 %v794, %v793
  %v807 = vpack.c.b16 %v796, %v795
  %v808 = vpack.c.b16 %v798, %v797
  %v809 = vpack.c.b16 %v800, %v799
  %v810 = vpack.c.b16 %v802, %v801
  %819 = vmatprep.subr.bf16.mxu0 0
  %820 = vmatpush1.bf16.msra.mxu0 %v803
  %821 = vmatprep.subr.bf16.mxu0 0
  %822 = vmatpush1.bf16.msra.mxu0 %v804
  %823 = vmatprep.subr.bf16.mxu0 0
  %824 = vmatpush1.bf16.msra.mxu0 %v805
  %825 = vmatprep.subr.bf16.mxu0 0
  %826 = vmatpush1.bf16.msra.mxu0 %v806
  %827 = vmatprep.subr.bf16.mxu0 0
  %828 = vmatpush1.bf16.msra.mxu0 %v807
  %829 = vmatprep.subr.bf16.mxu0 0
  %830 = vmatpush1.bf16.msra.mxu0 %v808
  %831 = vmatprep.subr.bf16.mxu0 0
  %832 = vmatpush1.bf16.msra.mxu0 %v809
  %833 = vmatprep.subr.bf16.mxu0 0
  %834 = vmatpush1.bf16.msra.mxu0 %v810
  %835 = vmatprep.subr.bf16.mxu0 0
  %836 = vmatpush1.bf16.msra.mxu0 0
  %837 = vmatprep.subr.bf16.mxu0 0
  %838 = vmatpush1.bf16.msra.mxu0 0
  %839 = vmatprep.subr.bf16.mxu0 0
  %840 = vmatpush1.bf16.msra.mxu0 0
  %841 = vmatprep.subr.bf16.mxu0 0
  %842 = vmatpush1.bf16.msra.mxu0 0
  %843 = vmatprep.subr.bf16.mxu0 0
  %844 = vmatpush1.bf16.msra.mxu0 0
  %845 = vmatprep.subr.bf16.mxu0 0
  %846 = vmatpush1.bf16.msra.mxu0 0
  %847 = vmatprep.subr.bf16.mxu0 0
  %848 = vmatpush1.bf16.msra.mxu0 0
  %849 = vmatprep.subr.bf16.mxu0 0
  %850 = vmatpush1.bf16.msra.mxu0 0
  %851 = vmatprep.mubr.bf16.mxu0 0
  %852 = vmatmul.mubr.bf16.gmra.mrb[0].mxu0 %v747
  %v853 = vpop.f32.mrb[0].mxu0
  %v854 = vadd.f32 %v769, %v853
  %v855 = vpop.f32.mrb[0].mxu0
  %v856 = vpop.f32.mrb[0].mxu0
  %v857 = vpop.f32.mrb[0].mxu0
  %858 = vdwg.mxu0
  %v859 = vmax.f32 %v854, 0.0
  %v860 = vpack.c.bf16 %v859, %v859
  %v861 = vld [vmem:[%s5] sm:$0xf]
  %v862 = vld [vmem:[%s5 + $0x4] sm:$0xf]
  %v863 = vld [vmem:[%s5 + $0x8] sm:$0xf]
  %v864 = vld [vmem:[%s5 + $0xc] sm:$0xf]
  %v865 = vld [vmem:[%s5 + $0x10] sm:$0xf]
  %v866 = vld [vmem:[%s5 + $0x14] sm:$0xf]
  %v867 = vld [vmem:[%s5 + $0x18] sm:$0xf]
  %v868 = vld [vmem:[%s5 + $0x1c] sm:$0xf]
  %v869 = vld [vmem:[%s6] sm:$0x1]
  %v871 = vlaneseq
  %v872 = vshrl.u32 %v871, 7
  %v873 = vsub.s32 0, %v872
  %v874 = vrot.slane %v869, %v873
  %v884 = vunpack.c.l.b16 %v861
  %v885 = vunpack.c.l.b16 %v862
  %v886 = vunpack.c.l.b16 %v863
  %v887 = vunpack.c.l.b16 %v864
  %v888 = vunpack.c.l.b16 %v865
  %v889 = vunpack.c.l.b16 %v866
  %v890 = vunpack.c.l.b16 %v867
  %v891 = vunpack.c.l.b16 %v868
  %v892 = vpack.c.b16 %v885, %v884
  %v893 = vpack.c.b16 %v887, %v886
  %v894 = vpack.c.b16 %v889, %v888
  %v895 = vpack.c.b16 %v891, %v890
  %vm900 = vcmask 523264
  %v902 = vsel %vm900, %v860, 0
  %904 = vmatprep.subr.bf16.mxu0 0
  %905 = vmatpush1.bf16.msra.mxu0 %v892
  %906 = vmatprep.subr.bf16.mxu0 0
  %907 = vmatpush1.bf16.msra.mxu0 %v893
  %908 = vmatprep.subr.bf16.mxu0 0
  %909 = vmatpush1.bf16.msra.mxu0 %v894
  %910 = vmatprep.subr.bf16.mxu0 0
  %911 = vmatpush1.bf16.msra.mxu0 %v895
  %912 = vmatprep.subr.bf16.mxu0 0
  %913 = vmatpush1.bf16.msra.mxu0 0
  %914 = vmatprep.subr.bf16.mxu0 0
  %915 = vmatpush1.bf16.msra.mxu0 0
  %916 = vmatprep.subr.bf16.mxu0 0
  %917 = vmatpush1.bf16.msra.mxu0 0
  %918 = vmatprep.subr.bf16.mxu0 0
  %919 = vmatpush1.bf16.msra.mxu0 0
  %920 = vmatprep.subr.bf16.mxu0 0
  %921 = vmatpush1.bf16.msra.mxu0 0
  %922 = vmatprep.subr.bf16.mxu0 0
  %923 = vmatpush1.bf16.msra.mxu0 0
  %924 = vmatprep.subr.bf16.mxu0 0
  %925 = vmatpush1.bf16.msra.mxu0 0
  %926 = vmatprep.subr.bf16.mxu0 0
  %927 = vmatpush1.bf16.msra.mxu0 0
  %928 = vmatprep.subr.bf16.mxu0 0
  %929 = vmatpush1.bf16.msra.mxu0 0
  %930 = vmatprep.subr.bf16.mxu0 0
  %931 = vmatpush1.bf16.msra.mxu0 0
  %932 = vmatprep.subr.bf16.mxu0 0
  %933 = vmatpush1.bf16.msra.mxu0 0
  %934 = vmatprep.subr.bf16.mxu0 0
  %935 = vmatpush1.bf16.msra.mxu0 0
  %936 = vmatprep.mubr.bf16.mxu0 0
  %937 = vmatmul.mubr.bf16.gmra.mrb[0].mxu0 %v902
  %v938 = vpop.f32.mrb[0].mxu0
  %v939 = vadd.f32 %v874, %v938
  %v940 = vpop.f32.mrb[0].mxu0
  %v941 = vpop.f32.mrb[0].mxu0
  %v942 = vpop.f32.mrb[0].mxu0
  %943 = vdwg.mxu0
  %v944 = vmax.f32 %v939, 0.0
  %v945 = vpack.c.bf16 %v944, %v944
  %v946 = vld [vmem:[%s7] sm:$0xf]
  %v947 = vld [vmem:[%s7 + $0x4] sm:$0x3]
  %v948 = vld [vmem:[%s8] sm:$0x1]
  %v950 = vlaneseq
  %v951 = vshrl.u32 %v950, 7
  %v952 = vsub.s32 0, %v951
  %v953 = vrot.slane %v948, %v952
  %v957 = vunpack.c.l.b16 %v946
  %v958 = vunpack.c.l.b16 %v947
  %v959 = vpack.c.b16 %v958, %v957
  %vm960 = vcmask 97280
  %v962 = vsel %vm960, %v945, 0
  %vm964 = vcmask 1045504
  %v966 = vsel %vm964, %v959, 0
  %968 = vmatprep.subr.bf16.mxu0 0
  %969 = vmatpush1.bf16.msra.mxu0 %v966
  %970 = vmatprep.subr.bf16.mxu0 0
  %971 = vmatpush1.bf16.msra.mxu0 0
  %972 = vmatprep.subr.bf16.mxu0 0
  %973 = vmatpush1.bf16.msra.mxu0 0
  %974 = vmatprep.subr.bf16.mxu0 0
  %975 = vmatpush1.bf16.msra.mxu0 0
  %976 = vmatprep.subr.bf16.mxu0 0
  %977 = vmatpush1.bf16.msra.mxu0 0
  %978 = vmatprep.subr.bf16.mxu0 0
  %979 = vmatpush1.bf16.msra.mxu0 0
  %980 = vmatprep.subr.bf16.mxu0 0
  %981 = vmatpush1.bf16.msra.mxu0 0
  %982 = vmatprep.subr.bf16.mxu0 0
  %983 = vmatpush1.bf16.msra.mxu0 0
  %984 = vmatprep.subr.bf16.mxu0 0
  %985 = vmatpush1.bf16.msra.mxu0 0
  %986 = vmatprep.subr.bf16.mxu0 0
  %987 = vmatpush1.bf16.msra.mxu0 0
  %988 = vmatprep.subr.bf16.mxu0 0
  %989 = vmatpush1.bf16.msra.mxu0 0
  %990 = vmatprep.subr.bf16.mxu0 0
  %991 = vmatpush1.bf16.msra.mxu0 0
  %992 = vmatprep.subr.bf16.mxu0 0
  %993 = vmatpush1.bf16.msra.mxu0 0
  %994 = vmatprep.subr.bf16.mxu0 0
  %995 = vmatpush1.bf16.msra.mxu0 0
  %996 = vmatprep.subr.bf16.mxu0 0
  %997 = vmatpush1.bf16.msra.mxu0 0
  %998 = vmatprep.subr.bf16.mxu0 0
  %999 = vmatpush1.bf16.msra.mxu0 0
  %1000 = vmatprep.mubr.bf16.mxu0 0
  %1001 = vmatmul.mubr.bf16.gmra.mrb[0].mxu0 %v962
  %v1002 = vpop.f32.mrb[0].mxu0
  %v1003 = vadd.f32 %v953, %v1002
  %v1004 = vpop.f32.mrb[0].mxu0
  %v1005 = vpop.f32.mrb[0].mxu0
  %v1006 = vpop.f32.mrb[0].mxu0
  %1007 = vdwg.mxu0
  %v1008 = vmax.f32 %v1003, 0.0
  %v1009 = vpack.c.bf16 %v1008, %v1008
  %v1010 = vld [vmem:[%s9] sm:$0xf]
  %v1011 = vld [vmem:[%s9 + $0x4] sm:$0x3]
  %v1012 = vld [vmem:[%s10] sm:$0x1]
  %v1014 = vlaneseq
  %v1015 = vshrl.u32 %v1014, 7
  %v1016 = vsub.s32 0, %v1015
  %v1017 = vrot.slane %v1012, %v1016
  %v1021 = vunpack.c.l.b16 %v1010
  %v1022 = vunpack.c.l.b16 %v1011
  %v1023 = vpack.c.b16 %v1022, %v1021
  %v1025 = vsel %vm960, %v1009, 0
  %v1028 = vsel %vm964, %v1023, 0
  %1030 = vmatprep.subr.bf16.mxu0 0
  %1031 = vmatpush1.bf16.msra.mxu0 %v1028
  %1032 = vmatprep.subr.bf16.mxu0 0
  %1033 = vmatpush1.bf16.msra.mxu0 0
  %1034 = vmatprep.subr.bf16.mxu0 0
  %1035 = vmatpush1.bf16.msra.mxu0 0
  %1036 = vmatprep.subr.bf16.mxu0 0
  %1037 = vmatpush1.bf16.msra.mxu0 0
  %1038 = vmatprep.subr.bf16.mxu0 0
  %1039 = vmatpush1.bf16.msra.mxu0 0
  %1040 = vmatprep.subr.bf16.mxu0 0
  %1041 = vmatpush1.bf16.msra.mxu0 0
  %1042 = vmatprep.subr.bf16.mxu0 0
  %1043 = vmatpush1.bf16.msra.mxu0 0
  %1044 = vmatprep.subr.bf16.mxu0 0
  %1045 = vmatpush1.bf16.msra.mxu0 0
  %1046 = vmatprep.subr.bf16.mxu0 0
  %1047 = vmatpush1.bf16.msra.mxu0 0
  %1048 = vmatprep.subr.bf16.mxu0 0
  %1049 = vmatpush1.bf16.msra.mxu0 0
  %1050 = vmatprep.subr.bf16.mxu0 0
  %1051 = vmatpush1.bf16.msra.mxu0 0
  %1052 = vmatprep.subr.bf16.mxu0 0
  %1053 = vmatpush1.bf16.msra.mxu0 0
  %1054 = vmatprep.subr.bf16.mxu0 0
  %1055 = vmatpush1.bf16.msra.mxu0 0
  %1056 = vmatprep.subr.bf16.mxu0 0
  %1057 = vmatpush1.bf16.msra.mxu0 0
  %1058 = vmatprep.subr.bf16.mxu0 0
  %1059 = vmatpush1.bf16.msra.mxu0 0
  %1060 = vmatprep.subr.bf16.mxu0 0
  %1061 = vmatpush1.bf16.msra.mxu0 0
  %1062 = vmatprep.mubr.bf16.mxu0 0
  %1063 = vmatmul.mubr.bf16.gmra.mrb[0].mxu0 %v1025
  %v1064 = vpop.f32.mrb[0].mxu0
  %v1065 = vadd.f32 %v1017, %v1064
  %v1066 = vpop.f32.mrb[0].mxu0
  %v1067 = vpop.f32.mrb[0].mxu0
  %v1068 = vpop.f32.mrb[0].mxu0
  %1069 = vdwg.mxu0
  %v1070 = vmax.f32 %v1065, 0.0
  %v1071 = vpack.c.bf16 %v1070, %v1070
  %v1072 = vld [vmem:[%s11] sm:$0xf]
  %v1073 = vld [vmem:[%s11 + $0x4] sm:$0xf]
  %v1074 = vld [vmem:[%s11 + $0x8] sm:$0xf]
  %v1075 = vld [vmem:[%s11 + $0xc] sm:$0xf]
  %v1076 = vld [vmem:[%s11 + $0x10] sm:$0xf]
  %v1077 = vld [vmem:[%s11 + $0x14] sm:$0xf]
  %v1078 = vld [vmem:[%s11 + $0x18] sm:$0xf]
  %v1079 = vld [vmem:[%s11 + $0x1c] sm:$0xf]
  %v1080 = vld [vmem:[%s12] sm:$0x1]
  %v1082 = vlaneseq
  %v1083 = vshrl.u32 %v1082, 7
  %v1084 = vsub.s32 0, %v1083
  %v1085 = vrot.slane %v1080, %v1084
  %v1095 = vunpack.c.l.b16 %v1072
  %v1096 = vunpack.c.l.b16 %v1073
  %v1097 = vunpack.c.l.b16 %v1074
  %v1098 = vunpack.c.l.b16 %v1075
  %v1099 = vunpack.c.l.b16 %v1076
  %v1100 = vunpack.c.l.b16 %v1077
  %v1101 = vunpack.c.l.b16 %v1078
  %v1102 = vunpack.c.l.b16 %v1079
  %v1103 = vpack.c.b16 %v1096, %v1095
  %v1104 = vpack.c.b16 %v1098, %v1097
  %v1105 = vpack.c.b16 %v1100, %v1099
  %v1106 = vpack.c.b16 %v1102, %v1101
  %v1112 = vsel %vm900, %v1071, 0
  %1114 = vmatprep.subr.bf16.mxu0 0
  %1115 = vmatpush1.bf16.msra.mxu0 %v1103
  %1116 = vmatprep.subr.bf16.mxu0 0
  %1117 = vmatpush1.bf16.msra.mxu0 %v1104
  %1118 = vmatprep.subr.bf16.mxu0 0
  %1119 = vmatpush1.bf16.msra.mxu0 %v1105
  %1120 = vmatprep.subr.bf16.mxu0 0
  %1121 = vmatpush1.bf16.msra.mxu0 %v1106
  %1122 = vmatprep.subr.bf16.mxu0 0
  %1123 = vmatpush1.bf16.msra.mxu0 0
  %1124 = vmatprep.subr.bf16.mxu0 0
  %1125 = vmatpush1.bf16.msra.mxu0 0
  %1126 = vmatprep.subr.bf16.mxu0 0
  %1127 = vmatpush1.bf16.msra.mxu0 0
  %1128 = vmatprep.subr.bf16.mxu0 0
  %1129 = vmatpush1.bf16.msra.mxu0 0
  %1130 = vmatprep.subr.bf16.mxu0 0
  %1131 = vmatpush1.bf16.msra.mxu0 0
  %1132 = vmatprep.subr.bf16.mxu0 0
  %1133 = vmatpush1.bf16.msra.mxu0 0
  %1134 = vmatprep.subr.bf16.mxu0 0
  %1135 = vmatpush1.bf16.msra.mxu0 0
  %1136 = vmatprep.subr.bf16.mxu0 0
  %1137 = vmatpush1.bf16.msra.mxu0 0
  %1138 = vmatprep.subr.bf16.mxu0 0
  %1139 = vmatpush1.bf16.msra.mxu0 0
  %1140 = vmatprep.subr.bf16.mxu0 0
  %1141 = vmatpush1.bf16.msra.mxu0 0
  %1142 = vmatprep.subr.bf16.mxu0 0
  %1143 = vmatpush1.bf16.msra.mxu0 0
  %1144 = vmatprep.subr.bf16.mxu0 0
  %1145 = vmatpush1.bf16.msra.mxu0 0
  %1146 = vmatprep.mubr.bf16.mxu0 0
  %1147 = vmatmul.mubr.bf16.gmra.mrb[0].mxu0 %v1112
  %v1148 = vpop.f32.mrb[0].mxu0
  %v1149 = vadd.f32 %v1085, %v1148
  %v1150 = vpop.f32.mrb[0].mxu0
  %v1151 = vpop.f32.mrb[0].mxu0
  %v1152 = vpop.f32.mrb[0].mxu0
  %1153 = vdwg.mxu0
  %v1154 = vmax.f32 %v1149, 0.0
  %v1155 = vpack.c.bf16 %v1154, %v1154
  %v1156 = vld [vmem:[%s13] sm:$0xff]
  %v1157 = vld [vmem:[%s13 + $0x8] sm:$0xff]
  %v1158 = vld [vmem:[%s13 + $0x10] sm:$0xff]
  %v1159 = vld [vmem:[%s13 + $0x18] sm:$0xff]
  %v1160 = vld [vmem:[%s13 + $0x20] sm:$0xff]
  %v1161 = vld [vmem:[%s13 + $0x28] sm:$0xff]
  %v1162 = vld [vmem:[%s13 + $0x30] sm:$0xff]
  %v1163 = vld [vmem:[%s13 + $0x38] sm:$0xff]
  %v1164 = vld [vmem:[%s13 + $0x40] sm:$0xff]
  %v1165 = vld [vmem:[%s13 + $0x48] sm:$0xff]
  %v1166 = vld [vmem:[%s13 + $0x50] sm:$0xff]
  %v1167 = vld [vmem:[%s13 + $0x58] sm:$0xff]
  %v1168 = vld [vmem:[%s13 + $0x60] sm:$0xff]
  %v1169 = vld [vmem:[%s13 + $0x68] sm:$0xff]
  %v1170 = vld [vmem:[%s13 + $0x70] sm:$0xff]
  %v1171 = vld [vmem:[%s13 + $0x78] sm:$0xff]
  %v1172 = vld [vmem:[%s13 + $0x80] sm:$0xff]
  %v1173 = vld [vmem:[%s13 + $0x88] sm:$0xff]
  %v1174 = vld [vmem:[%s13 + $0x90] sm:$0xff]
  %v1175 = vld [vmem:[%s13 + $0x98] sm:$0xff]
  %v1176 = vld [vmem:[%s13 + $0xa0] sm:$0xff]
  %v1177 = vld [vmem:[%s13 + $0xa8] sm:$0xff]
  %v1178 = vld [vmem:[%s13 + $0xb0] sm:$0xff]
  %v1179 = vld [vmem:[%s13 + $0xb8] sm:$0xff]
  %v1180 = vld [vmem:[%s13 + $0xc0] sm:$0xff]
  %v1181 = vld [vmem:[%s13 + $0xc8] sm:$0xff]
  %v1182 = vld [vmem:[%s13 + $0xd0] sm:$0xff]
  %v1183 = vld [vmem:[%s13 + $0xd8] sm:$0xff]
  %v1184 = vld [vmem:[%s13 + $0xe0] sm:$0xff]
  %v1185 = vld [vmem:[%s13 + $0xe8] sm:$0xff]
  %v1186 = vld [vmem:[%s13 + $0xf0] sm:$0xff]
  %v1187 = vld [vmem:[%s13 + $0xf8] sm:$0xff]
  %v1188 = vld [vmem:[%s13 + $0x100] sm:$0xff]
  %v1189 = vld [vmem:[%s13 + $0x108] sm:$0xff]
  %v1190 = vld [vmem:[%s13 + $0x110] sm:$0xff]
  %v1191 = vld [vmem:[%s13 + $0x118] sm:$0xff]
  %v1192 = vld [vmem:[%s13 + $0x120] sm:$0xff]
  %v1193 = vld [vmem:[%s13 + $0x128] sm:$0xff]
  %v1194 = vld [vmem:[%s13 + $0x130] sm:$0xff]
  %v1195 = vld [vmem:[%s13 + $0x138] sm:$0xff]
  %v1196 = vld [vmem:[%s13 + $0x140] sm:$0xff]
  %v1197 = vld [vmem:[%s13 + $0x148] sm:$0xff]
  %v1198 = vld [vmem:[%s13 + $0x150] sm:$0xff]
  %v1199 = vld [vmem:[%s13 + $0x158] sm:$0xff]
  %v1200 = vld [vmem:[%s13 + $0x160] sm:$0xff]
  %v1201 = vld [vmem:[%s13 + $0x168] sm:$0xff]
  %v1202 = vld [vmem:[%s13 + $0x170] sm:$0xff]
  %v1203 = vld [vmem:[%s13 + $0x178] sm:$0xff]
  %v1204 = vld [vmem:[%s13 + $0x180] sm:$0xff]
  %v1205 = vld [vmem:[%s13 + $0x188] sm:$0xff]
  %v1206 = vld [vmem:[%s13 + $0x190] sm:$0xff]
  %v1207 = vld [vmem:[%s13 + $0x198] sm:$0xff]
  %v1208 = vld [vmem:[%s13 + $0x1a0] sm:$0xff]
  %v1209 = vld [vmem:[%s13 + $0x1a8] sm:$0xff]
  %v1210 = vld [vmem:[%s13 + $0x1b0] sm:$0xff]
  %v1211 = vld [vmem:[%s13 + $0x1b8] sm:$0xff]
  %v1212 = vld [vmem:[%s13 + $0x1c0] sm:$0xff]
  %v1213 = vld [vmem:[%s13 + $0x1c8] sm:$0xff]
  %v1214 = vld [vmem:[%s13 + $0x1d0] sm:$0xff]
  %v1215 = vld [vmem:[%s13 + $0x1d8] sm:$0xff]
  %v1216 = vld [vmem:[%s13 + $0x1e0] sm:$0xff]
  %v1217 = vld [vmem:[%s13 + $0x1e8] sm:$0xff]
  %v1218 = vld [vmem:[%s13 + $0x1f0] sm:$0xff]
  %v1219 = vld [vmem:[%s13 + $0x1f8] sm:$0xff]
  %v1220 = vld [vmem:[%s14] sm:$0xff]
  %v1222 = vlaneseq
  %v1223 = vshrl.u32 %v1222, 7
  %v1224 = vsub.s32 0, %v1223
  %v1225 = vrot.slane %v1220, %v1224
  %v1226 = vlaneseq
  %v1227 = vshrl.u32 %v1226, 7
  %v1228 = vsub.s32 1, %v1227
  %v1229 = vrot.slane %v1220, %v1228
  %v1230 = vlaneseq
  %v1231 = vshrl.u32 %v1230, 7
  %v1232 = vsub.s32 2, %v1231
  %v1233 = vrot.slane %v1220, %v1232
  %v1234 = vlaneseq
  %v1235 = vshrl.u32 %v1234, 7
  %v1236 = vsub.s32 3, %v1235
  %v1237 = vrot.slane %v1220, %v1236
  %v1238 = vlaneseq
  %v1239 = vshrl.u32 %v1238, 7
  %v1240 = vsub.s32 4, %v1239
  %v1241 = vrot.slane %v1220, %v1240
  %v1242 = vlaneseq
  %v1243 = vshrl.u32 %v1242, 7
  %v1244 = vsub.s32 5, %v1243
  %v1245 = vrot.slane %v1220, %v1244
  %v1246 = vlaneseq
  %v1247 = vshrl.u32 %v1246, 7
  %v1248 = vsub.s32 6, %v1247
  %v1249 = vrot.slane %v1220, %v1248
  %v1250 = vlaneseq
  %v1251 = vshrl.u32 %v1250, 7
  %v1252 = vsub.s32 7, %v1251
  %v1253 = vrot.slane %v1220, %v1252
  %v1326 = vunpack.c.l.b16 %v1156
  %v1327 = vunpack.c.h.b16 %v1156
  %v1328 = vunpack.c.l.b16 %v1157
  %v1329 = vunpack.c.h.b16 %v1157
  %v1330 = vunpack.c.l.b16 %v1158
  %v1331 = vunpack.c.h.b16 %v1158
  %v1332 = vunpack.c.l.b16 %v1159
  %v1333 = vunpack.c.h.b16 %v1159
  %v1334 = vunpack.c.l.b16 %v1160
  %v1335 = vunpack.c.h.b16 %v1160
  %v1336 = vunpack.c.l.b16 %v1161
  %v1337 = vunpack.c.h.b16 %v1161
  %v1338 = vunpack.c.l.b16 %v1162
  %v1339 = vunpack.c.h.b16 %v1162
  %v1340 = vunpack.c.l.b16 %v1163
  %v1341 = vunpack.c.h.b16 %v1163
  %v1342 = vunpack.c.l.b16 %v1164
  %v1343 = vunpack.c.h.b16 %v1164
  %v1344 = vunpack.c.l.b16 %v1165
  %v1345 = vunpack.c.h.b16 %v1165
  %v1346 = vunpack.c.l.b16 %v1166
  %v1347 = vunpack.c.h.b16 %v1166
  %v1348 = vunpack.c.l.b16 %v1167
  %v1349 = vunpack.c.h.b16 %v1167
  %v1350 = vunpack.c.l.b16 %v1168
  %v1351 = vunpack.c.h.b16 %v1168
  %v1352 = vunpack.c.l.b16 %v1169
  %v1353 = vunpack.c.h.b16 %v1169
  %v1354 = vunpack.c.l.b16 %v1170
  %v1355 = vunpack.c.h.b16 %v1170
  %v1356 = vunpack.c.l.b16 %v1171
  %v1357 = vunpack.c.h.b16 %v1171
  %v1358 = vunpack.c.l.b16 %v1172
  %v1359 = vunpack.c.h.b16 %v1172
  %v1360 = vunpack.c.l.b16 %v1173
  %v1361 = vunpack.c.h.b16 %v1173
  %v1362 = vunpack.c.l.b16 %v1174
  %v1363 = vunpack.c.h.b16 %v1174
  %v1364 = vunpack.c.l.b16 %v1175
  %v1365 = vunpack.c.h.b16 %v1175
  %v1366 = vunpack.c.l.b16 %v1176
  %v1367 = vunpack.c.h.b16 %v1176
  %v1368 = vunpack.c.l.b16 %v1177
  %v1369 = vunpack.c.h.b16 %v1177
  %v1370 = vunpack.c.l.b16 %v1178
  %v1371 = vunpack.c.h.b16 %v1178
  %v1372 = vunpack.c.l.b16 %v1179
  %v1373 = vunpack.c.h.b16 %v1179
  %v1374 = vunpack.c.l.b16 %v1180
  %v1375 = vunpack.c.h.b16 %v1180
  %v1376 = vunpack.c.l.b16 %v1181
  %v1377 = vunpack.c.h.b16 %v1181
  %v1378 = vunpack.c.l.b16 %v1182
  %v1379 = vunpack.c.h.b16 %v1182
  %v1380 = vunpack.c.l.b16 %v1183
  %v1381 = vunpack.c.h.b16 %v1183
  %v1382 = vunpack.c.l.b16 %v1184
  %v1383 = vunpack.c.h.b16 %v1184
  %v1384 = vunpack.c.l.b16 %v1185
  %v1385 = vunpack.c.h.b16 %v1185
  %v1386 = vunpack.c.l.b16 %v1186
  %v1387 = vunpack.c.h.b16 %v1186
  %v1388 = vunpack.c.l.b16 %v1187
  %v1389 = vunpack.c.h.b16 %v1187
  %v1390 = vunpack.c.l.b16 %v1188
  %v1391 = vunpack.c.h.b16 %v1188
  %v1392 = vunpack.c.l.b16 %v1189
  %v1393 = vunpack.c.h.b16 %v1189
  %v1394 = vunpack.c.l.b16 %v1190
  %v1395 = vunpack.c.h.b16 %v1190
  %v1396 = vunpack.c.l.b16 %v1191
  %v1397 = vunpack.c.h.b16 %v1191
  %v1398 = vunpack.c.l.b16 %v1192
  %v1399 = vunpack.c.h.b16 %v1192
  %v1400 = vunpack.c.l.b16 %v1193
  %v1401 = vunpack.c.h.b16 %v1193
  %v1402 = vunpack.c.l.b16 %v1194
  %v1403 = vunpack.c.h.b16 %v1194
  %v1404 = vunpack.c.l.b16 %v1195
  %v1405 = vunpack.c.h.b16 %v1195
  %v1406 = vunpack.c.l.b16 %v1196
  %v1407 = vunpack.c.h.b16 %v1196
  %v1408 = vunpack.c.l.b16 %v1197
  %v1409 = vunpack.c.h.b16 %v1197
  %v1410 = vunpack.c.l.b16 %v1198
  %v1411 = vunpack.c.h.b16 %v1198
  %v1412 = vunpack.c.l.b16 %v1199
  %v1413 = vunpack.c.h.b16 %v1199
  %v1414 = vunpack.c.l.b16 %v1200
  %v1415 = vunpack.c.h.b16 %v1200
  %v1416 = vunpack.c.l.b16 %v1201
  %v1417 = vunpack.c.h.b16 %v1201
  %v1418 = vunpack.c.l.b16 %v1202
  %v1419 = vunpack.c.h.b16 %v1202
  %v1420 = vunpack.c.l.b16 %v1203
  %v1421 = vunpack.c.h.b16 %v1203
  %v1422 = vunpack.c.l.b16 %v1204
  %v1423 = vunpack.c.h.b16 %v1204
  %v1424 = vunpack.c.l.b16 %v1205
  %v1425 = vunpack.c.h.b16 %v1205
  %v1426 = vunpack.c.l.b16 %v1206
  %v1427 = vunpack.c.h.b16 %v1206
  %v1428 = vunpack.c.l.b16 %v1207
  %v1429 = vunpack.c.h.b16 %v1207
  %v1430 = vunpack.c.l.b16 %v1208
  %v1431 = vunpack.c.h.b16 %v1208
  %v1432 = vunpack.c.l.b16 %v1209
  %v1433 = vunpack.c.h.b16 %v1209
  %v1434 = vunpack.c.l.b16 %v1210
  %v1435 = vunpack.c.h.b16 %v1210
  %v1436 = vunpack.c.l.b16 %v1211
  %v1437 = vunpack.c.h.b16 %v1211
  %v1438 = vunpack.c.l.b16 %v1212
  %v1439 = vunpack.c.h.b16 %v1212
  %v1440 = vunpack.c.l.b16 %v1213
  %v1441 = vunpack.c.h.b16 %v1213
  %v1442 = vunpack.c.l.b16 %v1214
  %v1443 = vunpack.c.h.b16 %v1214
  %v1444 = vunpack.c.l.b16 %v1215
  %v1445 = vunpack.c.h.b16 %v1215
  %v1446 = vunpack.c.l.b16 %v1216
  %v1447 = vunpack.c.h.b16 %v1216
  %v1448 = vunpack.c.l.b16 %v1217
  %v1449 = vunpack.c.h.b16 %v1217
  %v1450 = vunpack.c.l.b16 %v1218
  %v1451 = vunpack.c.h.b16 %v1218
  %v1452 = vunpack.c.l.b16 %v1219
  %v1453 = vunpack.c.h.b16 %v1219
  %v1454 = vpack.c.b16 %v1334, %v1326
  %v1455 = vpack.c.b16 %v1335, %v1327
  %v1456 = vpack.c.b16 %v1336, %v1328
  %v1457 = vpack.c.b16 %v1337, %v1329
  %v1458 = vpack.c.b16 %v1338, %v1330
  %v1459 = vpack.c.b16 %v1339, %v1331
  %v1460 = vpack.c.b16 %v1340, %v1332
  %v1461 = vpack.c.b16 %v1341, %v1333
  %v1462 = vpack.c.b16 %v1350, %v1342
  %v1463 = vpack.c.b16 %v1351, %v1343
  %v1464 = vpack.c.b16 %v1352, %v1344
  %v1465 = vpack.c.b16 %v1353, %v1345
  %v1466 = vpack.c.b16 %v1354, %v1346
  %v1467 = vpack.c.b16 %v1355, %v1347
  %v1468 = vpack.c.b16 %v1356, %v1348
  %v1469 = vpack.c.b16 %v1357, %v1349
  %v1470 = vpack.c.b16 %v1366, %v1358
  %v1471 = vpack.c.b16 %v1367, %v1359
  %v1472 = vpack.c.b16 %v1368, %v1360
  %v1473 = vpack.c.b16 %v1369, %v1361
  %v1474 = vpack.c.b16 %v1370, %v1362
  %v1475 = vpack.c.b16 %v1371, %v1363
  %v1476 = vpack.c.b16 %v1372, %v1364
  %v1477 = vpack.c.b16 %v1373, %v1365
  %v1478 = vpack.c.b16 %v1382, %v1374
  %v1479 = vpack.c.b16 %v1383, %v1375
  %v1480 = vpack.c.b16 %v1384, %v1376
  %v1481 = vpack.c.b16 %v1385, %v1377
  %v1482 = vpack.c.b16 %v1386, %v1378
  %v1483 = vpack.c.b16 %v1387, %v1379
  %v1484 = vpack.c.b16 %v1388, %v1380
  %v1485 = vpack.c.b16 %v1389, %v1381
  %v1486 = vpack.c.b16 %v1398, %v1390
  %v1487 = vpack.c.b16 %v1399, %v1391
  %v1488 = vpack.c.b16 %v1400, %v1392
  %v1489 = vpack.c.b16 %v1401, %v1393
  %v1490 = vpack.c.b16 %v1402, %v1394
  %v1491 = vpack.c.b16 %v1403, %v1395
  %v1492 = vpack.c.b16 %v1404, %v1396
  %v1493 = vpack.c.b16 %v1405, %v1397
  %v1494 = vpack.c.b16 %v1414, %v1406
  %v1495 = vpack.c.b16 %v1415, %v1407
  %v1496 = vpack.c.b16 %v1416, %v1408
  %v1497 = vpack.c.b16 %v1417, %v1409
  %v1498 = vpack.c.b16 %v1418, %v1410
  %v1499 = vpack.c.b16 %v1419, %v1411
  %v1500 = vpack.c.b16 %v1420, %v1412
  %v1501 = vpack.c.b16 %v1421, %v1413
  %v1502 = vpack.c.b16 %v1430, %v1422
  %v1503 = vpack.c.b16 %v1431, %v1423
  %v1504 = vpack.c.b16 %v1432, %v1424
  %v1505 = vpack.c.b16 %v1433, %v1425
  %v1506 = vpack.c.b16 %v1434, %v1426
  %v1507 = vpack.c.b16 %v1435, %v1427
  %v1508 = vpack.c.b16 %v1436, %v1428
  %v1509 = vpack.c.b16 %v1437, %v1429
  %v1510 = vpack.c.b16 %v1446, %v1438
  %v1511 = vpack.c.b16 %v1447, %v1439
  %v1512 = vpack.c.b16 %v1448, %v1440
  %v1513 = vpack.c.b16 %v1449, %v1441
  %v1514 = vpack.c.b16 %v1450, %v1442
  %v1515 = vpack.c.b16 %v1451, %v1443
  %v1516 = vpack.c.b16 %v1452, %v1444
  %v1517 = vpack.c.b16 %v1453, %v1445
  %1582 = vmatprep.subr.bf16.mxu0 %v1455
  %1583 = vmatpush1.bf16.msra.mxu0 %v1454
  %1584 = vmatprep.subr.bf16.mxu0 %v1463
  %1585 = vmatpush1.bf16.msra.mxu0 %v1462
  %1586 = vmatprep.subr.bf16.mxu0 %v1471
  %1587 = vmatpush1.bf16.msra.mxu0 %v1470
  %1588 = vmatprep.subr.bf16.mxu0 %v1479
  %1589 = vmatpush1.bf16.msra.mxu0 %v1478
  %1590 = vmatprep.subr.bf16.mxu0 %v1487
  %1591 = vmatpush1.bf16.msra.mxu0 %v1486
  %1592 = vmatprep.subr.bf16.mxu0 %v1495
  %1593 = vmatpush1.bf16.msra.mxu0 %v1494
  %1594 = vmatprep.subr.bf16.mxu0 %v1503
  %1595 = vmatpush1.bf16.msra.mxu0 %v1502
  %1596 = vmatprep.subr.bf16.mxu0 %v1511
  %1597 = vmatpush1.bf16.msra.mxu0 %v1510
  %1598 = vmatprep.subr.bf16.mxu0 0
  %1599 = vmatpush1.bf16.msra.mxu0 0
  %1600 = vmatprep.subr.bf16.mxu0 0
  %1601 = vmatpush1.bf16.msra.mxu0 0
  %1602 = vmatprep.subr.bf16.mxu0 0
  %1603 = vmatpush1.bf16.msra.mxu0 0
  %1604 = vmatprep.subr.bf16.mxu0 0
  %1605 = vmatpush1.bf16.msra.mxu0 0
  %1606 = vmatprep.subr.bf16.mxu0 0
  %1607 = vmatpush1.bf16.msra.mxu0 0
  %1608 = vmatprep.subr.bf16.mxu0 0
  %1609 = vmatpush1.bf16.msra.mxu0 0
  %1610 = vmatprep.subr.bf16.mxu0 0
  %1611 = vmatpush1.bf16.msra.mxu0 0
  %1612 = vmatprep.subr.bf16.mxu0 0
  %1613 = vmatpush1.bf16.msra.mxu0 0
  %1614 = vmatprep.mubr.bf16.mxu0 0
  %1615 = vmatmul.mubr.bf16.gmra.mrb[0].mxu0 %v1155
  %v1616 = vpop.f32.mrb[0].mxu0
  %v1617 = vadd.f32 %v1225, %v1616
  %v1618 = vpop.f32.mrb[0].mxu0
  %v1619 = vadd.f32 %v1229, %v1618
  %v1620 = vpop.f32.mrb[0].mxu0
  %v1621 = vpop.f32.mrb[0].mxu0
  %1622 = vdwg.mxu0
  %1623 = vmatprep.subr.bf16.mxu0 %v1457
  %1624 = vmatpush1.bf16.msra.mxu0 %v1456
  %1625 = vmatprep.subr.bf16.mxu0 %v1465
  %1626 = vmatpush1.bf16.msra.mxu0 %v1464
  %1627 = vmatprep.subr.bf16.mxu0 %v1473
  %1628 = vmatpush1.bf16.msra.mxu0 %v1472
  %1629 = vmatprep.subr.bf16.mxu0 %v1481
  %1630 = vmatpush1.bf16.msra.mxu0 %v1480
  %1631 = vmatprep.subr.bf16.mxu0 %v1489
  %1632 = vmatpush1.bf16.msra.mxu0 %v1488
  %1633 = vmatprep.subr.bf16.mxu0 %v1497
  %1634 = vmatpush1.bf16.msra.mxu0 %v1496
  %1635 = vmatprep.subr.bf16.mxu0 %v1505
  %1636 = vmatpush1.bf16.msra.mxu0 %v1504
  %1637 = vmatprep.subr.bf16.mxu0 %v1513
  %1638 = vmatpush1.bf16.msra.mxu0 %v1512
  %1639 = vmatprep.subr.bf16.mxu0 0
  %1640 = vmatpush1.bf16.msra.mxu0 0
  %1641 = vmatprep.subr.bf16.mxu0 0
  %1642 = vmatpush1.bf16.msra.mxu0 0
  %1643 = vmatprep.subr.bf16.mxu0 0
  %1644 = vmatpush1.bf16.msra.mxu0 0
  %1645 = vmatprep.subr.bf16.mxu0 0
  %1646 = vmatpush1.bf16.msra.mxu0 0
  %1647 = vmatprep.subr.bf16.mxu0 0
  %1648 = vmatpush1.bf16.msra.mxu0 0
  %1649 = vmatprep.subr.bf16.mxu0 0
  %1650 = vmatpush1.bf16.msra.mxu0 0
  %1651 = vmatprep.subr.bf16.mxu0 0
  %1652 = vmatpush1.bf16.msra.mxu0 0
  %1653 = vmatprep.subr.bf16.mxu0 0
  %1654 = vmatpush1.bf16.msra.mxu0 0
  %1655 = vmatprep.mubr.bf16.mxu0 0
  %1656 = vmatmul.mubr.bf16.gmra.mrb[0].mxu0 %v1155
  %v1657 = vpop.f32.mrb[0].mxu0
  %v1658 = vadd.f32 %v1233, %v1657
  %v1659 = vpop.f32.mrb[0].mxu0
  %v1660 = vadd.f32 %v1237, %v1659
  %v1661 = vpop.f32.mrb[0].mxu0
  %v1662 = vpop.f32.mrb[0].mxu0
  %1663 = vdwg.mxu0
  %1664 = vmatprep.subr.bf16.mxu0 %v1459
  %1665 = vmatpush1.bf16.msra.mxu0 %v1458
  %1666 = vmatprep.subr.bf16.mxu0 %v1467
  %1667 = vmatpush1.bf16.msra.mxu0 %v1466
  %1668 = vmatprep.subr.bf16.mxu0 %v1475
  %1669 = vmatpush1.bf16.msra.mxu0 %v1474
  %1670 = vmatprep.subr.bf16.mxu0 %v1483
  %1671 = vmatpush1.bf16.msra.mxu0 %v1482
  %1672 = vmatprep.subr.bf16.mxu0 %v1491
  %1673 = vmatpush1.bf16.msra.mxu0 %v1490
  %1674 = vmatprep.subr.bf16.mxu0 %v1499
  %1675 = vmatpush1.bf16.msra.mxu0 %v1498
  %1676 = vmatprep.subr.bf16.mxu0 %v1507
  %1677 = vmatpush1.bf16.msra.mxu0 %v1506
  %1678 = vmatprep.subr.bf16.mxu0 %v1515
  %1679 = vmatpush1.bf16.msra.mxu0 %v1514
  %1680 = vmatprep.subr.bf16.mxu0 0
  %1681 = vmatpush1.bf16.msra.mxu0 0
  %1682 = vmatprep.subr.bf16.mxu0 0
  %1683 = vmatpush1.bf16.msra.mxu0 0
  %1684 = vmatprep.subr.bf16.mxu0 0
  %1685 = vmatpush1.bf16.msra.mxu0 0
  %1686 = vmatprep.subr.bf16.mxu0 0
  %1687 = vmatpush1.bf16.msra.mxu0 0
  %1688 = vmatprep.subr.bf16.mxu0 0
  %1689 = vmatpush1.bf16.msra.mxu0 0
  %1690 = vmatprep.subr.bf16.mxu0 0
  %1691 = vmatpush1.bf16.msra.mxu0 0
  %1692 = vmatprep.subr.bf16.mxu0 0
  %1693 = vmatpush1.bf16.msra.mxu0 0
  %1694 = vmatprep.subr.bf16.mxu0 0
  %1695 = vmatpush1.bf16.msra.mxu0 0
  %1696 = vmatprep.mubr.bf16.mxu0 0
  %1697 = vmatmul.mubr.bf16.gmra.mrb[0].mxu0 %v1155
  %v1698 = vpop.f32.mrb[0].mxu0
  %v1699 = vadd.f32 %v1241, %v1698
  %v1700 = vpop.f32.mrb[0].mxu0
  %v1701 = vadd.f32 %v1245, %v1700
  %v1702 = vpop.f32.mrb[0].mxu0
  %v1703 = vpop.f32.mrb[0].mxu0
  %1704 = vdwg.mxu0
  %1705 = vmatprep.subr.bf16.mxu0 %v1461
  %1706 = vmatpush1.bf16.msra.mxu0 %v1460
  %1707 = vmatprep.subr.bf16.mxu0 %v1469
  %1708 = vmatpush1.bf16.msra.mxu0 %v1468
  %1709 = vmatprep.subr.bf16.mxu0 %v1477
  %1710 = vmatpush1.bf16.msra.mxu0 %v1476
  %1711 = vmatprep.subr.bf16.mxu0 %v1485
  %1712 = vmatpush1.bf16.msra.mxu0 %v1484
  %1713 = vmatprep.subr.bf16.mxu0 %v1493
  %1714 = vmatpush1.bf16.msra.mxu0 %v1492
  %1715 = vmatprep.subr.bf16.mxu0 %v1501
  %1716 = vmatpush1.bf16.msra.mxu0 %v1500
  %1717 = vmatprep.subr.bf16.mxu0 %v1509
  %1718 = vmatpush1.bf16.msra.mxu0 %v1508
  %1719 = vmatprep.subr.bf16.mxu0 %v1517
  %1720 = vmatpush1.bf16.msra.mxu0 %v1516
  %1721 = vmatprep.subr.bf16.mxu0 0
  %1722 = vmatpush1.bf16.msra.mxu0 0
  %1723 = vmatprep.subr.bf16.mxu0 0
  %1724 = vmatpush1.bf16.msra.mxu0 0
  %1725 = vmatprep.subr.bf16.mxu0 0
  %1726 = vmatpush1.bf16.msra.mxu0 0
  %1727 = vmatprep.subr.bf16.mxu0 0
  %1728 = vmatpush1.bf16.msra.mxu0 0
  %1729 = vmatprep.subr.bf16.mxu0 0
  %1730 = vmatpush1.bf16.msra.mxu0 0
  %1731 = vmatprep.subr.bf16.mxu0 0
  %1732 = vmatpush1.bf16.msra.mxu0 0
  %1733 = vmatprep.subr.bf16.mxu0 0
  %1734 = vmatpush1.bf16.msra.mxu0 0
  %1735 = vmatprep.subr.bf16.mxu0 0
  %1736 = vmatpush1.bf16.msra.mxu0 0
  %1737 = vmatprep.mubr.bf16.mxu0 0
  %1738 = vmatmul.mubr.bf16.gmra.mrb[0].mxu0 %v1155
  %v1739 = vpop.f32.mrb[0].mxu0
  %v1740 = vadd.f32 %v1249, %v1739
  %v1741 = vpop.f32.mrb[0].mxu0
  %v1742 = vadd.f32 %v1253, %v1741
  %v1743 = vpop.f32.mrb[0].mxu0
  %v1744 = vpop.f32.mrb[0].mxu0
  %1745 = vdwg.mxu0
  %v1746 = vtanh.pop %v1617
  %v1747 = vtanh.pop %v1619
  %v1748 = vtanh.pop %v1658
  %v1749 = vtanh.pop %v1660
  %v1750 = vtanh.pop %v1699
  %v1751 = vtanh.pop %v1701
  %v1752 = vtanh.pop %v1740
  %v1753 = vtanh.pop %v1742
  %1754 = vst [vmem:[%s15] sm:$0xff] %v1746
  %1755 = vst [vmem:[%s15 + $0x8] sm:$0xff] %v1747
  %1756 = vst [vmem:[%s15 + $0x10] sm:$0xff] %v1748
  %1757 = vst [vmem:[%s15 + $0x18] sm:$0xff] %v1749
  %1758 = vst [vmem:[%s15 + $0x20] sm:$0xff] %v1750
  %1759 = vst [vmem:[%s15 + $0x28] sm:$0xff] %v1751
  %1760 = vst [vmem:[%s15 + $0x30] sm:$0xff] %v1752
  %1761 = vst [vmem:[%s15 + $0x38] sm:$0xff] %v1753
  // Predicated region
  $region62: #{linear_ae_forward.1} parent=0 // pred_check
    _
  $region63: #{linear_ae_forward.1} parent=0 // pred_check_branch
    %1763 = sbr.rel (0) target = $region65
  $region64: #{linear_ae_forward.1} parent=0 // pred_region
    _
  $region65: #{linear_ae_forward.1} parent=0 // pred_fallthru
    _
  // Predicated region
  $region66: #{linear_ae_forward.1} parent=0 // pred_check
    _
  $region67: #{linear_ae_forward.1} parent=0 // pred_check_branch
    %1765 = sbr.rel (0) target = $region69
  $region68: #{linear_ae_forward.1} parent=0 // pred_region
    _
  $region69: #{linear_ae_forward.1} parent=0 // pred_fallthru
    _

</llo_original>
